<compile_context>
chip_gen: v6e
topology: v6e:2x2x1
jax: 0.10.0
libtpu: 0.0.40
codegen_flags: <defaults>
</compile_context>

<pallas_src>
import functools

import jax
import jax.numpy as jnp
from jax import lax
from jax.experimental import pallas as pl
from jax.experimental.pallas import tpu as pltpu


def _dyn_conv_kernel(x_ref, w_ref, o_ref, *, cls_blk, x_per_class, gs, kh, kw,
                     sh, sw, dh, dw, Ho, Wo, G, row_strips):
    """One program = `cls_blk` classes of one batch element.

    x_ref: (x_cls_blk, G*gs*sh*sw, Hd, Wd) f32 VMEM  (lane = decimated W,
           sublane = decimated H; rows are (group, in-ch, stride-phase)).
    w_ref: (n_cls, C*gs*kh*kw) f32 SMEM  (whole weight array, scalar reads).
    o_ref: (1, cls_blk, C, Ho, Wo) VMEM  (lane = Wo, channel = g*gs + r).
    """
    jb = pl.program_id(1)
    khw = kh * kw
    P = gs * sh * sw

    def class_body(jj, carry):
        j = jb * cls_blk + jj                     # global class index (weights)
        xc = jj if x_per_class else 0             # x block row for this class

        def group_body(g, carry_g):
            xrow = g * P                          # base x row of group g
            wbase = g * (gs * gs * khw)           # base weight index of group g
            for r in range(gs):                   # output channel within group
                c = g * gs + r                    # output channel within class
                # Hoist the gs*kh*kw tap scalars (cheap SMEM reads) out of the
                # spatial strip loop.
                taps = []
                for i in range(gs):
                    for u in range(kh):
                        for v in range(kw):
                            taps.append(
                                w_ref[j, wbase + (r * gs + i) * khw + u * kw + v])
                for h0, hs in row_strips:         # Ho-strip accumulator tiling
                    acc = jnp.zeros((hs, Wo), jnp.float32)
                    t = 0
                    for i in range(gs):
                        for u in range(kh):
                            ah = (u * dh) // sh
                            p_h = (u * dh) % sh
                            for v in range(kw):
                                bw = (v * dw) // sw
                                q_w = (v * dw) % sw
                                flat = (i * sh + p_h) * sw + q_w
                                # contiguous static window; x is already f32.
                                patch = x_ref[xc, xrow + flat,
                                              ah + h0:ah + h0 + hs,
                                              bw:bw + Wo]
                                acc = acc + patch * taps[t]
                                t += 1
                    o_ref[0, jj, c, h0:h0 + hs, :] = acc.astype(o_ref.dtype)
            return carry_g

        lax.fori_loop(0, G, group_body, 0)
        return carry

    lax.fori_loop(0, cls_blk, class_body, 0)


def dynamic_conv2d(x, dynamic_weight, *, stride=(1, 1), padding=(0, 0),
                   dilation=(1, 1), is_first=True):
    """Pallas implementation of DynamicConv2d.forward((x, dynamic_weight))."""
    n_cls, D, kh, kw = dynamic_weight.shape
    sh, sw = stride
    ph, pw = padding
    dh, dw = dilation

    if is_first:
        B, C, H, W = x.shape
        B_eff = B
    else:
        BT, C, H, W = x.shape
        assert BT % n_cls == 0, "Input batch size does not match with n_cls"
        B = BT // n_cls
        B_eff = BT

    assert D % C == 0
    gs = D // C                                    # group_size
    # TODO(synk): groups spanning class boundaries (group_size not dividing
    # n_channels) have no clean per-class tiling; not supported here.
    assert C % gs == 0
    G = C // gs                                    # groups per class
    P = gs * sh * sw                               # decimation phases per group

    Hp, Wp = H + 2 * ph, W + 2 * pw
    Ho = (Hp - dh * (kh - 1) - 1) // sh + 1
    Wo = (Wp - dw * (kw - 1) - 1) // sw + 1
    Hd = -(-Hp // sh)                              # stride-phase-decimated dims
    Wd = -(-Wp // sw)

    out_dtype = x.dtype

    # ---- host-side layout plumbing (pad + stride-phase decimation) ----------
    # x_t[n, g*P + (i*sh+p)*sw+q, hd, wd] = x_pad[n, g*gs+i, hd*sh+p, wd*sw+q]
    # The f32 up-cast is fused by XLA into this same copy, removing per-tap
    # casts in the kernel.  For stride 1 the transpose is a pure reshape.
    xp = jnp.pad(x.astype(jnp.float32),
                 ((0, 0), (0, 0), (ph, ph + Hd * sh - Hp), (pw, pw + Wd * sw - Wp)))
    x_t = xp.reshape(B_eff, G, gs, Hd, sh, Wd, sw)
    x_t = x_t.transpose(0, 1, 2, 4, 6, 3, 5).reshape(B_eff, G * P, Hd, Wd)

    # Weights stay in their native (class, D*kh*kw) order; taps are read as
    # scalars from SMEM inside the kernel.
    # TODO(synk): very large n_cls*D*kh*kw (>~1 MiB) would need a blocked SMEM
    # path for the weights.
    w_s = dynamic_weight.reshape(n_cls, D * kh * kw).astype(jnp.float32)

    # ---- padded-footprint VMEM budgeting & divisor-based class folding ------
    def rup(v, m):
        return -(-v // m) * m

    def padded_bytes(shape, dtype):
        it = jnp.dtype(dtype).itemsize
        sub = max(32 // it, 8)                     # (8,128) f32 / (16,128) bf16
        lead = 1
        for d in shape[:-2]:
            lead *= d
        return lead * rup(shape[-2], sub) * rup(shape[-1], 128) * it

    try:
        vmem_cap = int(pltpu.get_tpu_info().vmem_capacity_bytes)
    except Exception:                               # fallback: 128 MiB parts
        vmem_cap = 128 * 2 ** 20
    fold_budget = int(0.35 * vmem_cap)              # ~45 MiB v5e/v6e, ~22 MiB v7x

    def footprint(cb):                              # double-buffered, tile-padded
        xb = padded_bytes(((1 if is_first else cb), G * P, Hd, Wd), jnp.float32)
        ob = padded_bytes((1, cb, C, Ho, Wo), out_dtype)
        return 2 * (xb + ob)

    # Largest divisor of n_cls that fits; keep >=2 total grid steps when B == 1
    # so both TensorCores get work on v7x.
    max_cb = n_cls if (B >= 2 or n_cls == 1) else max(n_cls // 2, 1)
    cls_blk = 1
    for cb in range(max_cb, 0, -1):
        if n_cls % cb == 0 and footprint(cb) <= fold_budget:
            cls_blk = cb
            break
    # TODO(synk): footprint(1) > ~0.75*VMEM (huge C/H/W) would need additional
    # G / Ho-strip grid tiling; not implemented here.
    vmem_limit = int(min(max(footprint(cls_blk) + (4 << 20), 32 << 20),
                         int(0.75 * vmem_cap)))

    # ---- Ho-strip schedule (bounded accumulator, aligned strip stores) ------
    wo_vregs = -(-Wo // 128)
    BH = 32
    while BH > 8 and (BH // 8) * wo_vregs > 16:
        BH //= 2
    row_strips, h0 = [], 0
    while h0 < Ho:
        hs = min(BH, Ho - h0)
        row_strips.append((h0, hs))
        h0 += hs
    row_strips = tuple(row_strips)

    grid = (B, n_cls // cls_blk)                    # class axis innermost
    x_cls_blk = 1 if is_first else cls_blk
    if is_first:
        # x block index constant over the class axis -> Pallas skips the re-DMA.
        # TODO(synk): pipeline_mode=pl.Buffered(1) here would halve the x VMEM
        # term on v7x at the cost of one exposed DMA per batch step.
        x_index = lambda b, jb: (b, 0, 0, 0)
    else:
        x_index = lambda b, jb: (b * (n_cls // cls_blk) + jb, 0, 0, 0)

    kernel = functools.partial(
        _dyn_conv_kernel, cls_blk=cls_blk, x_per_class=not is_first, gs=gs,
        kh=kh, kw=kw, sh=sh, sw=sw, dh=dh, dw=dw, Ho=Ho, Wo=Wo, G=G,
        row_strips=row_strips)

    out5 = pl.pallas_call(
        kernel,
        out_shape=jax.ShapeDtypeStruct((B, n_cls, C, Ho, Wo), out_dtype),
        grid=grid,
        in_specs=[
            pl.BlockSpec((x_cls_blk, G * P, Hd, Wd), x_index),
            pl.BlockSpec(memory_space=pltpu.MemorySpace.SMEM),
        ],
        out_specs=pl.BlockSpec((1, cls_blk, C, Ho, Wo),
                               lambda b, jb: (b, jb, 0, 0, 0)),
        compiler_params=pltpu.CompilerParams(
            dimension_semantics=("parallel", "parallel"),
            vmem_limit_bytes=vmem_limit),
    )(x_t, w_s)

    # Channel index is already g*gs + r -> pure reshape, no HBM transpose pass.
    return out5.reshape(B * n_cls, C, Ho, Wo)


def reference_dynamic_conv2d(x, dynamic_weight, *, stride=(1, 1),
                             padding=(0, 0), dilation=(1, 1), is_first=True):
    """Pure-JAX transcription of the PyTorch forward (correctness check)."""
    n_cls, D, kh, kw = dynamic_weight.shape
    if is_first:
        B, C, H, W = x.shape
        inp = jnp.tile(x, (1, n_cls, 1, 1))         # input.repeat(1,n_cls,1,1)
    else:
        BT, C, H, W = x.shape
        B = BT // n_cls
        inp = x.reshape(B, n_cls * C, H, W)         # input.view(...)
    gs = D // C
    groups = n_cls * C // gs
    w = dynamic_weight.reshape(-1, gs, kh, kw)
    out = lax.conv_general_dilated(
        inp, w, window_strides=stride,
        padding=[(padding[0], padding[0]), (padding[1], padding[1])],
        rhs_dilation=dilation,
        dimension_numbers=("NCHW", "OIHW", "NCHW"),
        feature_group_count=groups)
    Ho, Wo = out.shape[-2], out.shape[-1]
    return out.reshape(-1, C, Ho, Wo)


if __name__ == "__main__":
    key = jax.random.PRNGKey(0)
    k1, k2, k3 = jax.random.split(key, 3)

    # Small shapes: batch=2, channels=4, spatial=16x16, n_cls=3, group_size=2,
    # kernel 3x3.
    B, C, H, W = 2, 4, 16, 16
    n_cls, gs = 3, 2
    kh = kw = 3

    x = jax.random.normal(k1, (B, C, H, W), jnp.float32)
    dyn_w = 0.1 * jax.random.normal(k2, (n_cls, C * gs, kh, kw), jnp.float32)
    x2 = jax.random.normal(k3, (B * n_cls, C, H, W), jnp.float32)

    configs = [
        dict(stride=(1, 1), padding=(1, 1), dilation=(1, 1)),
        dict(stride=(2, 2), padding=(1, 1), dilation=(2, 2)),   # strided path
    ]
    for cfg in configs:
        for is_first, xin in ((True, x), (False, x2)):
            out = jax.block_until_ready(
                dynamic_conv2d(xin, dyn_w, is_first=is_first, **cfg))
            ref = reference_dynamic_conv2d(xin, dyn_w, is_first=is_first, **cfg)
            assert out.shape == ref.shape, (cfg, is_first, out.shape, ref.shape)
            assert jnp.allclose(out, ref, atol=1e-5, rtol=1e-5), (cfg, is_first)

    print("KERNEL_OK")
</pallas_src>

<mosaic_0001>
module attributes {stable_mosaic.version = 11 : i64} {
  func.func @_dyn_conv_kernel(%arg0: i32, %arg1: i32, %arg2: memref<1x4x18x18xf32, #tpu.memory_space<vmem>>, %arg3: memref<3x72xf32, #tpu.memory_space<smem>>, %arg4: memref<1x3x4x16x16xf32, #tpu.memory_space<vmem>>) attributes {dimension_semantics = [#tpu.dimension_semantics<parallel>, #tpu.dimension_semantics<parallel>], iteration_bounds = array<i64: 2, 1>, scalar_prefetch = 0 : i64, scratch_operands = 0 : i64, tpu.core_type = #tpu.core_type<tc>, window_params = [{transform_indices = @transform_0, window_bounds = array<i64: 1, 4, 18, 18>}, {transform_indices = @transform_1, window_bounds = array<i64: 3, 72>}, {transform_indices = @transform_2, window_bounds = array<i64: 1, 3, 4, 16, 16>}]} {
    %c0_i32 = arith.constant 0 : i32
    %c3_i32 = arith.constant 3 : i32
    %0 = arith.addi %c0_i32, %c3_i32 : i32
    %c1_i32 = arith.constant 1 : i32
    scf.for %arg5 = %c0_i32 to %0 step %c1_i32  : i32 {
      %c3_i32_1 = arith.constant 3 : i32
      %1 = arith.muli %arg1, %c3_i32_1 : i32
      %2 = arith.addi %1, %arg5 : i32
      %c0_i32_2 = arith.constant 0 : i32
      %c2_i32 = arith.constant 2 : i32
      %3 = arith.addi %c0_i32_2, %c2_i32 : i32
      %c1_i32_3 = arith.constant 1 : i32
      scf.for %arg6 = %c0_i32_2 to %3 step %c1_i32_3  : i32 {
        %c2_i32_5 = arith.constant 2 : i32
        %4 = arith.muli %arg6, %c2_i32_5 : i32
        %c36_i32 = arith.constant 36 : i32
        %5 = arith.muli %arg6, %c36_i32 : i32
        %c2_i32_6 = arith.constant 2 : i32
        %6 = arith.muli %arg6, %c2_i32_6 : i32
        %c0_i32_7 = arith.constant 0 : i32
        %7 = arith.addi %6, %c0_i32_7 : i32
        %c0_i32_8 = arith.constant 0 : i32
        %8 = arith.addi %5, %c0_i32_8 : i32
        %c0_i32_9 = arith.constant 0 : i32
        %9 = arith.addi %8, %c0_i32_9 : i32
        %c0_i32_10 = arith.constant 0 : i32
        %10 = arith.addi %9, %c0_i32_10 : i32
        %11 = arith.index_cast %2 : i32 to index
        %12 = arith.index_cast %10 : i32 to index
        %13 = memref.load %arg3[%11, %12] : memref<3x72xf32, #tpu.memory_space<smem>>
        %c0_i32_11 = arith.constant 0 : i32
        %14 = arith.addi %5, %c0_i32_11 : i32
        %c0_i32_12 = arith.constant 0 : i32
        %15 = arith.addi %14, %c0_i32_12 : i32
        %c1_i32_13 = arith.constant 1 : i32
        %16 = arith.addi %15, %c1_i32_13 : i32
        %17 = arith.index_cast %2 : i32 to index
        %18 = arith.index_cast %16 : i32 to index
        %19 = memref.load %arg3[%17, %18] : memref<3x72xf32, #tpu.memory_space<smem>>
        %c0_i32_14 = arith.constant 0 : i32
        %20 = arith.addi %5, %c0_i32_14 : i32
        %c0_i32_15 = arith.constant 0 : i32
        %21 = arith.addi %20, %c0_i32_15 : i32
        %c2_i32_16 = arith.constant 2 : i32
        %22 = arith.addi %21, %c2_i32_16 : i32
        %23 = arith.index_cast %2 : i32 to index
        %24 = arith.index_cast %22 : i32 to index
        %25 = memref.load %arg3[%23, %24] : memref<3x72xf32, #tpu.memory_space<smem>>
        %c0_i32_17 = arith.constant 0 : i32
        %26 = arith.addi %5, %c0_i32_17 : i32
        %c3_i32_18 = arith.constant 3 : i32
        %27 = arith.addi %26, %c3_i32_18 : i32
        %c0_i32_19 = arith.constant 0 : i32
        %28 = arith.addi %27, %c0_i32_19 : i32
        %29 = arith.index_cast %2 : i32 to index
        %30 = arith.index_cast %28 : i32 to index
        %31 = memref.load %arg3[%29, %30] : memref<3x72xf32, #tpu.memory_space<smem>>
        %c0_i32_20 = arith.constant 0 : i32
        %32 = arith.addi %5, %c0_i32_20 : i32
        %c3_i32_21 = arith.constant 3 : i32
        %33 = arith.addi %32, %c3_i32_21 : i32
        %c1_i32_22 = arith.constant 1 : i32
        %34 = arith.addi %33, %c1_i32_22 : i32
        %35 = arith.index_cast %2 : i32 to index
        %36 = arith.index_cast %34 : i32 to index
        %37 = memref.load %arg3[%35, %36] : memref<3x72xf32, #tpu.memory_space<smem>>
        %c0_i32_23 = arith.constant 0 : i32
        %38 = arith.addi %5, %c0_i32_23 : i32
        %c3_i32_24 = arith.constant 3 : i32
        %39 = arith.addi %38, %c3_i32_24 : i32
        %c2_i32_25 = arith.constant 2 : i32
        %40 = arith.addi %39, %c2_i32_25 : i32
        %41 = arith.index_cast %2 : i32 to index
        %42 = arith.index_cast %40 : i32 to index
        %43 = memref.load %arg3[%41, %42] : memref<3x72xf32, #tpu.memory_space<smem>>
        %c0_i32_26 = arith.constant 0 : i32
        %44 = arith.addi %5, %c0_i32_26 : i32
        %c6_i32 = arith.constant 6 : i32
        %45 = arith.addi %44, %c6_i32 : i32
        %c0_i32_27 = arith.constant 0 : i32
        %46 = arith.addi %45, %c0_i32_27 : i32
        %47 = arith.index_cast %2 : i32 to index
        %48 = arith.index_cast %46 : i32 to index
        %49 = memref.load %arg3[%47, %48] : memref<3x72xf32, #tpu.memory_space<smem>>
        %c0_i32_28 = arith.constant 0 : i32
        %50 = arith.addi %5, %c0_i32_28 : i32
        %c6_i32_29 = arith.constant 6 : i32
        %51 = arith.addi %50, %c6_i32_29 : i32
        %c1_i32_30 = arith.constant 1 : i32
        %52 = arith.addi %51, %c1_i32_30 : i32
        %53 = arith.index_cast %2 : i32 to index
        %54 = arith.index_cast %52 : i32 to index
        %55 = memref.load %arg3[%53, %54] : memref<3x72xf32, #tpu.memory_space<smem>>
        %c0_i32_31 = arith.constant 0 : i32
        %56 = arith.addi %5, %c0_i32_31 : i32
        %c6_i32_32 = arith.constant 6 : i32
        %57 = arith.addi %56, %c6_i32_32 : i32
        %c2_i32_33 = arith.constant 2 : i32
        %58 = arith.addi %57, %c2_i32_33 : i32
        %59 = arith.index_cast %2 : i32 to index
        %60 = arith.index_cast %58 : i32 to index
        %61 = memref.load %arg3[%59, %60] : memref<3x72xf32, #tpu.memory_space<smem>>
        %c9_i32 = arith.constant 9 : i32
        %62 = arith.addi %5, %c9_i32 : i32
        %c0_i32_34 = arith.constant 0 : i32
        %63 = arith.addi %62, %c0_i32_34 : i32
        %c0_i32_35 = arith.constant 0 : i32
        %64 = arith.addi %63, %c0_i32_35 : i32
        %65 = arith.index_cast %2 : i32 to index
        %66 = arith.index_cast %64 : i32 to index
        %67 = memref.load %arg3[%65, %66] : memref<3x72xf32, #tpu.memory_space<smem>>
        %c9_i32_36 = arith.constant 9 : i32
        %68 = arith.addi %5, %c9_i32_36 : i32
        %c0_i32_37 = arith.constant 0 : i32
        %69 = arith.addi %68, %c0_i32_37 : i32
        %c1_i32_38 = arith.constant 1 : i32
        %70 = arith.addi %69, %c1_i32_38 : i32
        %71 = arith.index_cast %2 : i32 to index
        %72 = arith.index_cast %70 : i32 to index
        %73 = memref.load %arg3[%71, %72] : memref<3x72xf32, #tpu.memory_space<smem>>
        %c9_i32_39 = arith.constant 9 : i32
        %74 = arith.addi %5, %c9_i32_39 : i32
        %c0_i32_40 = arith.constant 0 : i32
        %75 = arith.addi %74, %c0_i32_40 : i32
        %c2_i32_41 = arith.constant 2 : i32
        %76 = arith.addi %75, %c2_i32_41 : i32
        %77 = arith.index_cast %2 : i32 to index
        %78 = arith.index_cast %76 : i32 to index
        %79 = memref.load %arg3[%77, %78] : memref<3x72xf32, #tpu.memory_space<smem>>
        %c9_i32_42 = arith.constant 9 : i32
        %80 = arith.addi %5, %c9_i32_42 : i32
        %c3_i32_43 = arith.constant 3 : i32
        %81 = arith.addi %80, %c3_i32_43 : i32
        %c0_i32_44 = arith.constant 0 : i32
        %82 = arith.addi %81, %c0_i32_44 : i32
        %83 = arith.index_cast %2 : i32 to index
        %84 = arith.index_cast %82 : i32 to index
        %85 = memref.load %arg3[%83, %84] : memref<3x72xf32, #tpu.memory_space<smem>>
        %c9_i32_45 = arith.constant 9 : i32
        %86 = arith.addi %5, %c9_i32_45 : i32
        %c3_i32_46 = arith.constant 3 : i32
        %87 = arith.addi %86, %c3_i32_46 : i32
        %c1_i32_47 = arith.constant 1 : i32
        %88 = arith.addi %87, %c1_i32_47 : i32
        %89 = arith.index_cast %2 : i32 to index
        %90 = arith.index_cast %88 : i32 to index
        %91 = memref.load %arg3[%89, %90] : memref<3x72xf32, #tpu.memory_space<smem>>
        %c9_i32_48 = arith.constant 9 : i32
        %92 = arith.addi %5, %c9_i32_48 : i32
        %c3_i32_49 = arith.constant 3 : i32
        %93 = arith.addi %92, %c3_i32_49 : i32
        %c2_i32_50 = arith.constant 2 : i32
        %94 = arith.addi %93, %c2_i32_50 : i32
        %95 = arith.index_cast %2 : i32 to index
        %96 = arith.index_cast %94 : i32 to index
        %97 = memref.load %arg3[%95, %96] : memref<3x72xf32, #tpu.memory_space<smem>>
        %c9_i32_51 = arith.constant 9 : i32
        %98 = arith.addi %5, %c9_i32_51 : i32
        %c6_i32_52 = arith.constant 6 : i32
        %99 = arith.addi %98, %c6_i32_52 : i32
        %c0_i32_53 = arith.constant 0 : i32
        %100 = arith.addi %99, %c0_i32_53 : i32
        %101 = arith.index_cast %2 : i32 to index
        %102 = arith.index_cast %100 : i32 to index
        %103 = memref.load %arg3[%101, %102] : memref<3x72xf32, #tpu.memory_space<smem>>
        %c9_i32_54 = arith.constant 9 : i32
        %104 = arith.addi %5, %c9_i32_54 : i32
        %c6_i32_55 = arith.constant 6 : i32
        %105 = arith.addi %104, %c6_i32_55 : i32
        %c1_i32_56 = arith.constant 1 : i32
        %106 = arith.addi %105, %c1_i32_56 : i32
        %107 = arith.index_cast %2 : i32 to index
        %108 = arith.index_cast %106 : i32 to index
        %109 = memref.load %arg3[%107, %108] : memref<3x72xf32, #tpu.memory_space<smem>>
        %c9_i32_57 = arith.constant 9 : i32
        %110 = arith.addi %5, %c9_i32_57 : i32
        %c6_i32_58 = arith.constant 6 : i32
        %111 = arith.addi %110, %c6_i32_58 : i32
        %c2_i32_59 = arith.constant 2 : i32
        %112 = arith.addi %111, %c2_i32_59 : i32
        %113 = arith.index_cast %2 : i32 to index
        %114 = arith.index_cast %112 : i32 to index
        %115 = memref.load %arg3[%113, %114] : memref<3x72xf32, #tpu.memory_space<smem>>
        %cst = arith.constant 0.000000e+00 : f32
        %116 = vector.broadcast %cst : f32 to vector<16x16xf32>
        %c0_i32_60 = arith.constant 0 : i32
        %117 = arith.addi %4, %c0_i32_60 : i32
        %c0 = arith.constant 0 : index
        %118 = arith.index_cast %117 : i32 to index
        %c0_61 = arith.constant 0 : index
        %c0_62 = arith.constant 0 : index
        %119 = vector.load %arg2[%c0, %118, %c0_61, %c0_62] : memref<1x4x18x18xf32, #tpu.memory_space<vmem>>, vector<1x1x16x16xf32>
        %120 = vector.shape_cast %119 : vector<1x1x16x16xf32> to vector<16x16xf32>
        %121 = vector.broadcast %13 : f32 to vector<16x16xf32>
        %122 = arith.mulf %120, %121 : vector<16x16xf32>
        %123 = arith.addf %116, %122 : vector<16x16xf32>
        %c0_i32_63 = arith.constant 0 : i32
        %124 = arith.addi %4, %c0_i32_63 : i32
        %c0_64 = arith.constant 0 : index
        %125 = arith.index_cast %124 : i32 to index
        %c0_65 = arith.constant 0 : index
        %c1 = arith.constant 1 : index
        %126 = vector.load %arg2[%c0_64, %125, %c0_65, %c1] : memref<1x4x18x18xf32, #tpu.memory_space<vmem>>, vector<1x1x16x16xf32>
        %127 = vector.shape_cast %126 : vector<1x1x16x16xf32> to vector<16x16xf32>
        %128 = vector.broadcast %19 : f32 to vector<16x16xf32>
        %129 = arith.mulf %127, %128 : vector<16x16xf32>
        %130 = arith.addf %123, %129 : vector<16x16xf32>
        %c0_i32_66 = arith.constant 0 : i32
        %131 = arith.addi %4, %c0_i32_66 : i32
        %c0_67 = arith.constant 0 : index
        %132 = arith.index_cast %131 : i32 to index
        %c0_68 = arith.constant 0 : index
        %c2 = arith.constant 2 : index
        %133 = vector.load %arg2[%c0_67, %132, %c0_68, %c2] : memref<1x4x18x18xf32, #tpu.memory_space<vmem>>, vector<1x1x16x16xf32>
        %134 = vector.shape_cast %133 : vector<1x1x16x16xf32> to vector<16x16xf32>
        %135 = vector.broadcast %25 : f32 to vector<16x16xf32>
        %136 = arith.mulf %134, %135 : vector<16x16xf32>
        %137 = arith.addf %130, %136 : vector<16x16xf32>
        %c0_i32_69 = arith.constant 0 : i32
        %138 = arith.addi %4, %c0_i32_69 : i32
        %c0_70 = arith.constant 0 : index
        %139 = arith.index_cast %138 : i32 to index
        %c1_71 = arith.constant 1 : index
        %c0_72 = arith.constant 0 : index
        %140 = vector.load %arg2[%c0_70, %139, %c1_71, %c0_72] : memref<1x4x18x18xf32, #tpu.memory_space<vmem>>, vector<1x1x16x16xf32>
        %141 = vector.shape_cast %140 : vector<1x1x16x16xf32> to vector<16x16xf32>
        %142 = vector.broadcast %31 : f32 to vector<16x16xf32>
        %143 = arith.mulf %141, %142 : vector<16x16xf32>
        %144 = arith.addf %137, %143 : vector<16x16xf32>
        %c0_i32_73 = arith.constant 0 : i32
        %145 = arith.addi %4, %c0_i32_73 : i32
        %c0_74 = arith.constant 0 : index
        %146 = arith.index_cast %145 : i32 to index
        %c1_75 = arith.constant 1 : index
        %c1_76 = arith.constant 1 : index
        %147 = vector.load %arg2[%c0_74, %146, %c1_75, %c1_76] : memref<1x4x18x18xf32, #tpu.memory_space<vmem>>, vector<1x1x16x16xf32>
        %148 = vector.shape_cast %147 : vector<1x1x16x16xf32> to vector<16x16xf32>
        %149 = vector.broadcast %37 : f32 to vector<16x16xf32>
        %150 = arith.mulf %148, %149 : vector<16x16xf32>
        %151 = arith.addf %144, %150 : vector<16x16xf32>
        %c0_i32_77 = arith.constant 0 : i32
        %152 = arith.addi %4, %c0_i32_77 : i32
        %c0_78 = arith.constant 0 : index
        %153 = arith.index_cast %152 : i32 to index
        %c1_79 = arith.constant 1 : index
        %c2_80 = arith.constant 2 : index
        %154 = vector.load %arg2[%c0_78, %153, %c1_79, %c2_80] : memref<1x4x18x18xf32, #tpu.memory_space<vmem>>, vector<1x1x16x16xf32>
        %155 = vector.shape_cast %154 : vector<1x1x16x16xf32> to vector<16x16xf32>
        %156 = vector.broadcast %43 : f32 to vector<16x16xf32>
        %157 = arith.mulf %155, %156 : vector<16x16xf32>
        %158 = arith.addf %151, %157 : vector<16x16xf32>
        %c0_i32_81 = arith.constant 0 : i32
        %159 = arith.addi %4, %c0_i32_81 : i32
        %c0_82 = arith.constant 0 : index
        %160 = arith.index_cast %159 : i32 to index
        %c2_83 = arith.constant 2 : index
        %c0_84 = arith.constant 0 : index
        %161 = vector.load %arg2[%c0_82, %160, %c2_83, %c0_84] : memref<1x4x18x18xf32, #tpu.memory_space<vmem>>, vector<1x1x16x16xf32>
        %162 = vector.shape_cast %161 : vector<1x1x16x16xf32> to vector<16x16xf32>
        %163 = vector.broadcast %49 : f32 to vector<16x16xf32>
        %164 = arith.mulf %162, %163 : vector<16x16xf32>
        %165 = arith.addf %158, %164 : vector<16x16xf32>
        %c0_i32_85 = arith.constant 0 : i32
        %166 = arith.addi %4, %c0_i32_85 : i32
        %c0_86 = arith.constant 0 : index
        %167 = arith.index_cast %166 : i32 to index
        %c2_87 = arith.constant 2 : index
        %c1_88 = arith.constant 1 : index
        %168 = vector.load %arg2[%c0_86, %167, %c2_87, %c1_88] : memref<1x4x18x18xf32, #tpu.memory_space<vmem>>, vector<1x1x16x16xf32>
        %169 = vector.shape_cast %168 : vector<1x1x16x16xf32> to vector<16x16xf32>
        %170 = vector.broadcast %55 : f32 to vector<16x16xf32>
        %171 = arith.mulf %169, %170 : vector<16x16xf32>
        %172 = arith.addf %165, %171 : vector<16x16xf32>
        %c0_i32_89 = arith.constant 0 : i32
        %173 = arith.addi %4, %c0_i32_89 : i32
        %c0_90 = arith.constant 0 : index
        %174 = arith.index_cast %173 : i32 to index
        %c2_91 = arith.constant 2 : index
        %c2_92 = arith.constant 2 : index
        %175 = vector.load %arg2[%c0_90, %174, %c2_91, %c2_92] : memref<1x4x18x18xf32, #tpu.memory_space<vmem>>, vector<1x1x16x16xf32>
        %176 = vector.shape_cast %175 : vector<1x1x16x16xf32> to vector<16x16xf32>
        %177 = vector.broadcast %61 : f32 to vector<16x16xf32>
        %178 = arith.mulf %176, %177 : vector<16x16xf32>
        %179 = arith.addf %172, %178 : vector<16x16xf32>
        %c1_i32_93 = arith.constant 1 : i32
        %180 = arith.addi %4, %c1_i32_93 : i32
        %c0_94 = arith.constant 0 : index
        %181 = arith.index_cast %180 : i32 to index
        %c0_95 = arith.constant 0 : index
        %c0_96 = arith.constant 0 : index
        %182 = vector.load %arg2[%c0_94, %181, %c0_95, %c0_96] : memref<1x4x18x18xf32, #tpu.memory_space<vmem>>, vector<1x1x16x16xf32>
        %183 = vector.shape_cast %182 : vector<1x1x16x16xf32> to vector<16x16xf32>
        %184 = vector.broadcast %67 : f32 to vector<16x16xf32>
        %185 = arith.mulf %183, %184 : vector<16x16xf32>
        %186 = arith.addf %179, %185 : vector<16x16xf32>
        %c1_i32_97 = arith.constant 1 : i32
        %187 = arith.addi %4, %c1_i32_97 : i32
        %c0_98 = arith.constant 0 : index
        %188 = arith.index_cast %187 : i32 to index
        %c0_99 = arith.constant 0 : index
        %c1_100 = arith.constant 1 : index
        %189 = vector.load %arg2[%c0_98, %188, %c0_99, %c1_100] : memref<1x4x18x18xf32, #tpu.memory_space<vmem>>, vector<1x1x16x16xf32>
        %190 = vector.shape_cast %189 : vector<1x1x16x16xf32> to vector<16x16xf32>
        %191 = vector.broadcast %73 : f32 to vector<16x16xf32>
        %192 = arith.mulf %190, %191 : vector<16x16xf32>
        %193 = arith.addf %186, %192 : vector<16x16xf32>
        %c1_i32_101 = arith.constant 1 : i32
        %194 = arith.addi %4, %c1_i32_101 : i32
        %c0_102 = arith.constant 0 : index
        %195 = arith.index_cast %194 : i32 to index
        %c0_103 = arith.constant 0 : index
        %c2_104 = arith.constant 2 : index
        %196 = vector.load %arg2[%c0_102, %195, %c0_103, %c2_104] : memref<1x4x18x18xf32, #tpu.memory_space<vmem>>, vector<1x1x16x16xf32>
        %197 = vector.shape_cast %196 : vector<1x1x16x16xf32> to vector<16x16xf32>
        %198 = vector.broadcast %79 : f32 to vector<16x16xf32>
        %199 = arith.mulf %197, %198 : vector<16x16xf32>
        %200 = arith.addf %193, %199 : vector<16x16xf32>
        %c1_i32_105 = arith.constant 1 : i32
        %201 = arith.addi %4, %c1_i32_105 : i32
        %c0_106 = arith.constant 0 : index
        %202 = arith.index_cast %201 : i32 to index
        %c1_107 = arith.constant 1 : index
        %c0_108 = arith.constant 0 : index
        %203 = vector.load %arg2[%c0_106, %202, %c1_107, %c0_108] : memref<1x4x18x18xf32, #tpu.memory_space<vmem>>, vector<1x1x16x16xf32>
        %204 = vector.shape_cast %203 : vector<1x1x16x16xf32> to vector<16x16xf32>
        %205 = vector.broadcast %85 : f32 to vector<16x16xf32>
        %206 = arith.mulf %204, %205 : vector<16x16xf32>
        %207 = arith.addf %200, %206 : vector<16x16xf32>
        %c1_i32_109 = arith.constant 1 : i32
        %208 = arith.addi %4, %c1_i32_109 : i32
        %c0_110 = arith.constant 0 : index
        %209 = arith.index_cast %208 : i32 to index
        %c1_111 = arith.constant 1 : index
        %c1_112 = arith.constant 1 : index
        %210 = vector.load %arg2[%c0_110, %209, %c1_111, %c1_112] : memref<1x4x18x18xf32, #tpu.memory_space<vmem>>, vector<1x1x16x16xf32>
        %211 = vector.shape_cast %210 : vector<1x1x16x16xf32> to vector<16x16xf32>
        %212 = vector.broadcast %91 : f32 to vector<16x16xf32>
        %213 = arith.mulf %211, %212 : vector<16x16xf32>
        %214 = arith.addf %207, %213 : vector<16x16xf32>
        %c1_i32_113 = arith.constant 1 : i32
        %215 = arith.addi %4, %c1_i32_113 : i32
        %c0_114 = arith.constant 0 : index
        %216 = arith.index_cast %215 : i32 to index
        %c1_115 = arith.constant 1 : index
        %c2_116 = arith.constant 2 : index
        %217 = vector.load %arg2[%c0_114, %216, %c1_115, %c2_116] : memref<1x4x18x18xf32, #tpu.memory_space<vmem>>, vector<1x1x16x16xf32>
        %218 = vector.shape_cast %217 : vector<1x1x16x16xf32> to vector<16x16xf32>
        %219 = vector.broadcast %97 : f32 to vector<16x16xf32>
        %220 = arith.mulf %218, %219 : vector<16x16xf32>
        %221 = arith.addf %214, %220 : vector<16x16xf32>
        %c1_i32_117 = arith.constant 1 : i32
        %222 = arith.addi %4, %c1_i32_117 : i32
        %c0_118 = arith.constant 0 : index
        %223 = arith.index_cast %222 : i32 to index
        %c2_119 = arith.constant 2 : index
        %c0_120 = arith.constant 0 : index
        %224 = vector.load %arg2[%c0_118, %223, %c2_119, %c0_120] : memref<1x4x18x18xf32, #tpu.memory_space<vmem>>, vector<1x1x16x16xf32>
        %225 = vector.shape_cast %224 : vector<1x1x16x16xf32> to vector<16x16xf32>
        %226 = vector.broadcast %103 : f32 to vector<16x16xf32>
        %227 = arith.mulf %225, %226 : vector<16x16xf32>
        %228 = arith.addf %221, %227 : vector<16x16xf32>
        %c1_i32_121 = arith.constant 1 : i32
        %229 = arith.addi %4, %c1_i32_121 : i32
        %c0_122 = arith.constant 0 : index
        %230 = arith.index_cast %229 : i32 to index
        %c2_123 = arith.constant 2 : index
        %c1_124 = arith.constant 1 : index
        %231 = vector.load %arg2[%c0_122, %230, %c2_123, %c1_124] : memref<1x4x18x18xf32, #tpu.memory_space<vmem>>, vector<1x1x16x16xf32>
        %232 = vector.shape_cast %231 : vector<1x1x16x16xf32> to vector<16x16xf32>
        %233 = vector.broadcast %109 : f32 to vector<16x16xf32>
        %234 = arith.mulf %232, %233 : vector<16x16xf32>
        %235 = arith.addf %228, %234 : vector<16x16xf32>
        %c1_i32_125 = arith.constant 1 : i32
        %236 = arith.addi %4, %c1_i32_125 : i32
        %c0_126 = arith.constant 0 : index
        %237 = arith.index_cast %236 : i32 to index
        %c2_127 = arith.constant 2 : index
        %c2_128 = arith.constant 2 : index
        %238 = vector.load %arg2[%c0_126, %237, %c2_127, %c2_128] : memref<1x4x18x18xf32, #tpu.memory_space<vmem>>, vector<1x1x16x16xf32>
        %239 = vector.shape_cast %238 : vector<1x1x16x16xf32> to vector<16x16xf32>
        %240 = vector.broadcast %115 : f32 to vector<16x16xf32>
        %241 = arith.mulf %239, %240 : vector<16x16xf32>
        %242 = arith.addf %235, %241 : vector<16x16xf32>
        %c0_129 = arith.constant 0 : index
        %243 = arith.index_cast %arg5 : i32 to index
        %244 = arith.index_cast %7 : i32 to index
        %c0_130 = arith.constant 0 : index
        %c0_131 = arith.constant 0 : index
        %245 = vector.load %arg4[%c0_129, %243, %244, %c0_130, %c0_131] : memref<1x3x4x16x16xf32, #tpu.memory_space<vmem>>, vector<1x1x1x16x16xf32>
        %246 = vector.shape_cast %245 : vector<1x1x1x16x16xf32> to vector<16x16xf32>
        %247 = vector.shape_cast %242 : vector<16x16xf32> to vector<1x1x1x16x16xf32>
        tpu.vector_store %arg4[%c0_129, %243, %244, %c0_130, %c0_131], %247 {strides = array<i32>} : memref<1x3x4x16x16xf32, #tpu.memory_space<vmem>>, vector<1x1x1x16x16xf32>,
        %c2_i32_132 = arith.constant 2 : i32
        %248 = arith.muli %arg6, %c2_i32_132 : i32
        %c1_i32_133 = arith.constant 1 : i32
        %249 = arith.addi %248, %c1_i32_133 : i32
        %c18_i32 = arith.constant 18 : i32
        %250 = arith.addi %5, %c18_i32 : i32
        %c0_i32_134 = arith.constant 0 : i32
        %251 = arith.addi %250, %c0_i32_134 : i32
        %c0_i32_135 = arith.constant 0 : i32
        %252 = arith.addi %251, %c0_i32_135 : i32
        %253 = arith.index_cast %2 : i32 to index
        %254 = arith.index_cast %252 : i32 to index
        %255 = memref.load %arg3[%253, %254] : memref<3x72xf32, #tpu.memory_space<smem>>
        %c18_i32_136 = arith.constant 18 : i32
        %256 = arith.addi %5, %c18_i32_136 : i32
        %c0_i32_137 = arith.constant 0 : i32
        %257 = arith.addi %256, %c0_i32_137 : i32
        %c1_i32_138 = arith.constant 1 : i32
        %258 = arith.addi %257, %c1_i32_138 : i32
        %259 = arith.index_cast %2 : i32 to index
        %260 = arith.index_cast %258 : i32 to index
        %261 = memref.load %arg3[%259, %260] : memref<3x72xf32, #tpu.memory_space<smem>>
        %c18_i32_139 = arith.constant 18 : i32
        %262 = arith.addi %5, %c18_i32_139 : i32
        %c0_i32_140 = arith.constant 0 : i32
        %263 = arith.addi %262, %c0_i32_140 : i32
        %c2_i32_141 = arith.constant 2 : i32
        %264 = arith.addi %263, %c2_i32_141 : i32
        %265 = arith.index_cast %2 : i32 to index
        %266 = arith.index_cast %264 : i32 to index
        %267 = memref.load %arg3[%265, %266] : memref<3x72xf32, #tpu.memory_space<smem>>
        %c18_i32_142 = arith.constant 18 : i32
        %268 = arith.addi %5, %c18_i32_142 : i32
        %c3_i32_143 = arith.constant 3 : i32
        %269 = arith.addi %268, %c3_i32_143 : i32
        %c0_i32_144 = arith.constant 0 : i32
        %270 = arith.addi %269, %c0_i32_144 : i32
        %271 = arith.index_cast %2 : i32 to index
        %272 = arith.index_cast %270 : i32 to index
        %273 = memref.load %arg3[%271, %272] : memref<3x72xf32, #tpu.memory_space<smem>>
        %c18_i32_145 = arith.constant 18 : i32
        %274 = arith.addi %5, %c18_i32_145 : i32
        %c3_i32_146 = arith.constant 3 : i32
        %275 = arith.addi %274, %c3_i32_146 : i32
        %c1_i32_147 = arith.constant 1 : i32
        %276 = arith.addi %275, %c1_i32_147 : i32
        %277 = arith.index_cast %2 : i32 to index
        %278 = arith.index_cast %276 : i32 to index
        %279 = memref.load %arg3[%277, %278] : memref<3x72xf32, #tpu.memory_space<smem>>
        %c18_i32_148 = arith.constant 18 : i32
        %280 = arith.addi %5, %c18_i32_148 : i32
        %c3_i32_149 = arith.constant 3 : i32
        %281 = arith.addi %280, %c3_i32_149 : i32
        %c2_i32_150 = arith.constant 2 : i32
        %282 = arith.addi %281, %c2_i32_150 : i32
        %283 = arith.index_cast %2 : i32 to index
        %284 = arith.index_cast %282 : i32 to index
        %285 = memref.load %arg3[%283, %284] : memref<3x72xf32, #tpu.memory_space<smem>>
        %c18_i32_151 = arith.constant 18 : i32
        %286 = arith.addi %5, %c18_i32_151 : i32
        %c6_i32_152 = arith.constant 6 : i32
        %287 = arith.addi %286, %c6_i32_152 : i32
        %c0_i32_153 = arith.constant 0 : i32
        %288 = arith.addi %287, %c0_i32_153 : i32
        %289 = arith.index_cast %2 : i32 to index
        %290 = arith.index_cast %288 : i32 to index
        %291 = memref.load %arg3[%289, %290] : memref<3x72xf32, #tpu.memory_space<smem>>
        %c18_i32_154 = arith.constant 18 : i32
        %292 = arith.addi %5, %c18_i32_154 : i32
        %c6_i32_155 = arith.constant 6 : i32
        %293 = arith.addi %292, %c6_i32_155 : i32
        %c1_i32_156 = arith.constant 1 : i32
        %294 = arith.addi %293, %c1_i32_156 : i32
        %295 = arith.index_cast %2 : i32 to index
        %296 = arith.index_cast %294 : i32 to index
        %297 = memref.load %arg3[%295, %296] : memref<3x72xf32, #tpu.memory_space<smem>>
        %c18_i32_157 = arith.constant 18 : i32
        %298 = arith.addi %5, %c18_i32_157 : i32
        %c6_i32_158 = arith.constant 6 : i32
        %299 = arith.addi %298, %c6_i32_158 : i32
        %c2_i32_159 = arith.constant 2 : i32
        %300 = arith.addi %299, %c2_i32_159 : i32
        %301 = arith.index_cast %2 : i32 to index
        %302 = arith.index_cast %300 : i32 to index
        %303 = memref.load %arg3[%301, %302] : memref<3x72xf32, #tpu.memory_space<smem>>
        %c27_i32 = arith.constant 27 : i32
        %304 = arith.addi %5, %c27_i32 : i32
        %c0_i32_160 = arith.constant 0 : i32
        %305 = arith.addi %304, %c0_i32_160 : i32
        %c0_i32_161 = arith.constant 0 : i32
        %306 = arith.addi %305, %c0_i32_161 : i32
        %307 = arith.index_cast %2 : i32 to index
        %308 = arith.index_cast %306 : i32 to index
        %309 = memref.load %arg3[%307, %308] : memref<3x72xf32, #tpu.memory_space<smem>>
        %c27_i32_162 = arith.constant 27 : i32
        %310 = arith.addi %5, %c27_i32_162 : i32
        %c0_i32_163 = arith.constant 0 : i32
        %311 = arith.addi %310, %c0_i32_163 : i32
        %c1_i32_164 = arith.constant 1 : i32
        %312 = arith.addi %311, %c1_i32_164 : i32
        %313 = arith.index_cast %2 : i32 to index
        %314 = arith.index_cast %312 : i32 to index
        %315 = memref.load %arg3[%313, %314] : memref<3x72xf32, #tpu.memory_space<smem>>
        %c27_i32_165 = arith.constant 27 : i32
        %316 = arith.addi %5, %c27_i32_165 : i32
        %c0_i32_166 = arith.constant 0 : i32
        %317 = arith.addi %316, %c0_i32_166 : i32
        %c2_i32_167 = arith.constant 2 : i32
        %318 = arith.addi %317, %c2_i32_167 : i32
        %319 = arith.index_cast %2 : i32 to index
        %320 = arith.index_cast %318 : i32 to index
        %321 = memref.load %arg3[%319, %320] : memref<3x72xf32, #tpu.memory_space<smem>>
        %c27_i32_168 = arith.constant 27 : i32
        %322 = arith.addi %5, %c27_i32_168 : i32
        %c3_i32_169 = arith.constant 3 : i32
        %323 = arith.addi %322, %c3_i32_169 : i32
        %c0_i32_170 = arith.constant 0 : i32
        %324 = arith.addi %323, %c0_i32_170 : i32
        %325 = arith.index_cast %2 : i32 to index
        %326 = arith.index_cast %324 : i32 to index
        %327 = memref.load %arg3[%325, %326] : memref<3x72xf32, #tpu.memory_space<smem>>
        %c27_i32_171 = arith.constant 27 : i32
        %328 = arith.addi %5, %c27_i32_171 : i32
        %c3_i32_172 = arith.constant 3 : i32
        %329 = arith.addi %328, %c3_i32_172 : i32
        %c1_i32_173 = arith.constant 1 : i32
        %330 = arith.addi %329, %c1_i32_173 : i32
        %331 = arith.index_cast %2 : i32 to index
        %332 = arith.index_cast %330 : i32 to index
        %333 = memref.load %arg3[%331, %332] : memref<3x72xf32, #tpu.memory_space<smem>>
        %c27_i32_174 = arith.constant 27 : i32
        %334 = arith.addi %5, %c27_i32_174 : i32
        %c3_i32_175 = arith.constant 3 : i32
        %335 = arith.addi %334, %c3_i32_175 : i32
        %c2_i32_176 = arith.constant 2 : i32
        %336 = arith.addi %335, %c2_i32_176 : i32
        %337 = arith.index_cast %2 : i32 to index
        %338 = arith.index_cast %336 : i32 to index
        %339 = memref.load %arg3[%337, %338] : memref<3x72xf32, #tpu.memory_space<smem>>
        %c27_i32_177 = arith.constant 27 : i32
        %340 = arith.addi %5, %c27_i32_177 : i32
        %c6_i32_178 = arith.constant 6 : i32
        %341 = arith.addi %340, %c6_i32_178 : i32
        %c0_i32_179 = arith.constant 0 : i32
        %342 = arith.addi %341, %c0_i32_179 : i32
        %343 = arith.index_cast %2 : i32 to index
        %344 = arith.index_cast %342 : i32 to index
        %345 = memref.load %arg3[%343, %344] : memref<3x72xf32, #tpu.memory_space<smem>>
        %c27_i32_180 = arith.constant 27 : i32
        %346 = arith.addi %5, %c27_i32_180 : i32
        %c6_i32_181 = arith.constant 6 : i32
        %347 = arith.addi %346, %c6_i32_181 : i32
        %c1_i32_182 = arith.constant 1 : i32
        %348 = arith.addi %347, %c1_i32_182 : i32
        %349 = arith.index_cast %2 : i32 to index
        %350 = arith.index_cast %348 : i32 to index
        %351 = memref.load %arg3[%349, %350] : memref<3x72xf32, #tpu.memory_space<smem>>
        %c27_i32_183 = arith.constant 27 : i32
        %352 = arith.addi %5, %c27_i32_183 : i32
        %c6_i32_184 = arith.constant 6 : i32
        %353 = arith.addi %352, %c6_i32_184 : i32
        %c2_i32_185 = arith.constant 2 : i32
        %354 = arith.addi %353, %c2_i32_185 : i32
        %355 = arith.index_cast %2 : i32 to index
        %356 = arith.index_cast %354 : i32 to index
        %357 = memref.load %arg3[%355, %356] : memref<3x72xf32, #tpu.memory_space<smem>>
        %cst_186 = arith.constant 0.000000e+00 : f32
        %358 = vector.broadcast %cst_186 : f32 to vector<16x16xf32>
        %c0_i32_187 = arith.constant 0 : i32
        %359 = arith.addi %4, %c0_i32_187 : i32
        %c0_188 = arith.constant 0 : index
        %360 = arith.index_cast %359 : i32 to index
        %c0_189 = arith.constant 0 : index
        %c0_190 = arith.constant 0 : index
        %361 = vector.load %arg2[%c0_188, %360, %c0_189, %c0_190] : memref<1x4x18x18xf32, #tpu.memory_space<vmem>>, vector<1x1x16x16xf32>
        %362 = vector.shape_cast %361 : vector<1x1x16x16xf32> to vector<16x16xf32>
        %363 = vector.broadcast %255 : f32 to vector<16x16xf32>
        %364 = arith.mulf %362, %363 : vector<16x16xf32>
        %365 = arith.addf %358, %364 : vector<16x16xf32>
        %c0_i32_191 = arith.constant 0 : i32
        %366 = arith.addi %4, %c0_i32_191 : i32
        %c0_192 = arith.constant 0 : index
        %367 = arith.index_cast %366 : i32 to index
        %c0_193 = arith.constant 0 : index
        %c1_194 = arith.constant 1 : index
        %368 = vector.load %arg2[%c0_192, %367, %c0_193, %c1_194] : memref<1x4x18x18xf32, #tpu.memory_space<vmem>>, vector<1x1x16x16xf32>
        %369 = vector.shape_cast %368 : vector<1x1x16x16xf32> to vector<16x16xf32>
        %370 = vector.broadcast %261 : f32 to vector<16x16xf32>
        %371 = arith.mulf %369, %370 : vector<16x16xf32>
        %372 = arith.addf %365, %371 : vector<16x16xf32>
        %c0_i32_195 = arith.constant 0 : i32
        %373 = arith.addi %4, %c0_i32_195 : i32
        %c0_196 = arith.constant 0 : index
        %374 = arith.index_cast %373 : i32 to index
        %c0_197 = arith.constant 0 : index
        %c2_198 = arith.constant 2 : index
        %375 = vector.load %arg2[%c0_196, %374, %c0_197, %c2_198] : memref<1x4x18x18xf32, #tpu.memory_space<vmem>>, vector<1x1x16x16xf32>
        %376 = vector.shape_cast %375 : vector<1x1x16x16xf32> to vector<16x16xf32>
        %377 = vector.broadcast %267 : f32 to vector<16x16xf32>
        %378 = arith.mulf %376, %377 : vector<16x16xf32>
        %379 = arith.addf %372, %378 : vector<16x16xf32>
        %c0_i32_199 = arith.constant 0 : i32
        %380 = arith.addi %4, %c0_i32_199 : i32
        %c0_200 = arith.constant 0 : index
        %381 = arith.index_cast %380 : i32 to index
        %c1_201 = arith.constant 1 : index
        %c0_202 = arith.constant 0 : index
        %382 = vector.load %arg2[%c0_200, %381, %c1_201, %c0_202] : memref<1x4x18x18xf32, #tpu.memory_space<vmem>>, vector<1x1x16x16xf32>
        %383 = vector.shape_cast %382 : vector<1x1x16x16xf32> to vector<16x16xf32>
        %384 = vector.broadcast %273 : f32 to vector<16x16xf32>
        %385 = arith.mulf %383, %384 : vector<16x16xf32>
        %386 = arith.addf %379, %385 : vector<16x16xf32>
        %c0_i32_203 = arith.constant 0 : i32
        %387 = arith.addi %4, %c0_i32_203 : i32
        %c0_204 = arith.constant 0 : index
        %388 = arith.index_cast %387 : i32 to index
        %c1_205 = arith.constant 1 : index
        %c1_206 = arith.constant 1 : index
        %389 = vector.load %arg2[%c0_204, %388, %c1_205, %c1_206] : memref<1x4x18x18xf32, #tpu.memory_space<vmem>>, vector<1x1x16x16xf32>
        %390 = vector.shape_cast %389 : vector<1x1x16x16xf32> to vector<16x16xf32>
        %391 = vector.broadcast %279 : f32 to vector<16x16xf32>
        %392 = arith.mulf %390, %391 : vector<16x16xf32>
        %393 = arith.addf %386, %392 : vector<16x16xf32>
        %c0_i32_207 = arith.constant 0 : i32
        %394 = arith.addi %4, %c0_i32_207 : i32
        %c0_208 = arith.constant 0 : index
        %395 = arith.index_cast %394 : i32 to index
        %c1_209 = arith.constant 1 : index
        %c2_210 = arith.constant 2 : index
        %396 = vector.load %arg2[%c0_208, %395, %c1_209, %c2_210] : memref<1x4x18x18xf32, #tpu.memory_space<vmem>>, vector<1x1x16x16xf32>
        %397 = vector.shape_cast %396 : vector<1x1x16x16xf32> to vector<16x16xf32>
        %398 = vector.broadcast %285 : f32 to vector<16x16xf32>
        %399 = arith.mulf %397, %398 : vector<16x16xf32>
        %400 = arith.addf %393, %399 : vector<16x16xf32>
        %c0_i32_211 = arith.constant 0 : i32
        %401 = arith.addi %4, %c0_i32_211 : i32
        %c0_212 = arith.constant 0 : index
        %402 = arith.index_cast %401 : i32 to index
        %c2_213 = arith.constant 2 : index
        %c0_214 = arith.constant 0 : index
        %403 = vector.load %arg2[%c0_212, %402, %c2_213, %c0_214] : memref<1x4x18x18xf32, #tpu.memory_space<vmem>>, vector<1x1x16x16xf32>
        %404 = vector.shape_cast %403 : vector<1x1x16x16xf32> to vector<16x16xf32>
        %405 = vector.broadcast %291 : f32 to vector<16x16xf32>
        %406 = arith.mulf %404, %405 : vector<16x16xf32>
        %407 = arith.addf %400, %406 : vector<16x16xf32>
        %c0_i32_215 = arith.constant 0 : i32
        %408 = arith.addi %4, %c0_i32_215 : i32
        %c0_216 = arith.constant 0 : index
        %409 = arith.index_cast %408 : i32 to index
        %c2_217 = arith.constant 2 : index
        %c1_218 = arith.constant 1 : index
        %410 = vector.load %arg2[%c0_216, %409, %c2_217, %c1_218] : memref<1x4x18x18xf32, #tpu.memory_space<vmem>>, vector<1x1x16x16xf32>
        %411 = vector.shape_cast %410 : vector<1x1x16x16xf32> to vector<16x16xf32>
        %412 = vector.broadcast %297 : f32 to vector<16x16xf32>
        %413 = arith.mulf %411, %412 : vector<16x16xf32>
        %414 = arith.addf %407, %413 : vector<16x16xf32>
        %c0_i32_219 = arith.constant 0 : i32
        %415 = arith.addi %4, %c0_i32_219 : i32
        %c0_220 = arith.constant 0 : index
        %416 = arith.index_cast %415 : i32 to index
        %c2_221 = arith.constant 2 : index
        %c2_222 = arith.constant 2 : index
        %417 = vector.load %arg2[%c0_220, %416, %c2_221, %c2_222] : memref<1x4x18x18xf32, #tpu.memory_space<vmem>>, vector<1x1x16x16xf32>
        %418 = vector.shape_cast %417 : vector<1x1x16x16xf32> to vector<16x16xf32>
        %419 = vector.broadcast %303 : f32 to vector<16x16xf32>
        %420 = arith.mulf %418, %419 : vector<16x16xf32>
        %421 = arith.addf %414, %420 : vector<16x16xf32>
        %c1_i32_223 = arith.constant 1 : i32
        %422 = arith.addi %4, %c1_i32_223 : i32
        %c0_224 = arith.constant 0 : index
        %423 = arith.index_cast %422 : i32 to index
        %c0_225 = arith.constant 0 : index
        %c0_226 = arith.constant 0 : index
        %424 = vector.load %arg2[%c0_224, %423, %c0_225, %c0_226] : memref<1x4x18x18xf32, #tpu.memory_space<vmem>>, vector<1x1x16x16xf32>
        %425 = vector.shape_cast %424 : vector<1x1x16x16xf32> to vector<16x16xf32>
        %426 = vector.broadcast %309 : f32 to vector<16x16xf32>
        %427 = arith.mulf %425, %426 : vector<16x16xf32>
        %428 = arith.addf %421, %427 : vector<16x16xf32>
        %c1_i32_227 = arith.constant 1 : i32
        %429 = arith.addi %4, %c1_i32_227 : i32
        %c0_228 = arith.constant 0 : index
        %430 = arith.index_cast %429 : i32 to index
        %c0_229 = arith.constant 0 : index
        %c1_230 = arith.constant 1 : index
        %431 = vector.load %arg2[%c0_228, %430, %c0_229, %c1_230] : memref<1x4x18x18xf32, #tpu.memory_space<vmem>>, vector<1x1x16x16xf32>
        %432 = vector.shape_cast %431 : vector<1x1x16x16xf32> to vector<16x16xf32>
        %433 = vector.broadcast %315 : f32 to vector<16x16xf32>
        %434 = arith.mulf %432, %433 : vector<16x16xf32>
        %435 = arith.addf %428, %434 : vector<16x16xf32>
        %c1_i32_231 = arith.constant 1 : i32
        %436 = arith.addi %4, %c1_i32_231 : i32
        %c0_232 = arith.constant 0 : index
        %437 = arith.index_cast %436 : i32 to index
        %c0_233 = arith.constant 0 : index
        %c2_234 = arith.constant 2 : index
        %438 = vector.load %arg2[%c0_232, %437, %c0_233, %c2_234] : memref<1x4x18x18xf32, #tpu.memory_space<vmem>>, vector<1x1x16x16xf32>
        %439 = vector.shape_cast %438 : vector<1x1x16x16xf32> to vector<16x16xf32>
        %440 = vector.broadcast %321 : f32 to vector<16x16xf32>
        %441 = arith.mulf %439, %440 : vector<16x16xf32>
        %442 = arith.addf %435, %441 : vector<16x16xf32>
        %c1_i32_235 = arith.constant 1 : i32
        %443 = arith.addi %4, %c1_i32_235 : i32
        %c0_236 = arith.constant 0 : index
        %444 = arith.index_cast %443 : i32 to index
        %c1_237 = arith.constant 1 : index
        %c0_238 = arith.constant 0 : index
        %445 = vector.load %arg2[%c0_236, %444, %c1_237, %c0_238] : memref<1x4x18x18xf32, #tpu.memory_space<vmem>>, vector<1x1x16x16xf32>
        %446 = vector.shape_cast %445 : vector<1x1x16x16xf32> to vector<16x16xf32>
        %447 = vector.broadcast %327 : f32 to vector<16x16xf32>
        %448 = arith.mulf %446, %447 : vector<16x16xf32>
        %449 = arith.addf %442, %448 : vector<16x16xf32>
        %c1_i32_239 = arith.constant 1 : i32
        %450 = arith.addi %4, %c1_i32_239 : i32
        %c0_240 = arith.constant 0 : index
        %451 = arith.index_cast %450 : i32 to index
        %c1_241 = arith.constant 1 : index
        %c1_242 = arith.constant 1 : index
        %452 = vector.load %arg2[%c0_240, %451, %c1_241, %c1_242] : memref<1x4x18x18xf32, #tpu.memory_space<vmem>>, vector<1x1x16x16xf32>
        %453 = vector.shape_cast %452 : vector<1x1x16x16xf32> to vector<16x16xf32>
        %454 = vector.broadcast %333 : f32 to vector<16x16xf32>
        %455 = arith.mulf %453, %454 : vector<16x16xf32>
        %456 = arith.addf %449, %455 : vector<16x16xf32>
        %c1_i32_243 = arith.constant 1 : i32
        %457 = arith.addi %4, %c1_i32_243 : i32
        %c0_244 = arith.constant 0 : index
        %458 = arith.index_cast %457 : i32 to index
        %c1_245 = arith.constant 1 : index
        %c2_246 = arith.constant 2 : index
        %459 = vector.load %arg2[%c0_244, %458, %c1_245, %c2_246] : memref<1x4x18x18xf32, #tpu.memory_space<vmem>>, vector<1x1x16x16xf32>
        %460 = vector.shape_cast %459 : vector<1x1x16x16xf32> to vector<16x16xf32>
        %461 = vector.broadcast %339 : f32 to vector<16x16xf32>
        %462 = arith.mulf %460, %461 : vector<16x16xf32>
        %463 = arith.addf %456, %462 : vector<16x16xf32>
        %c1_i32_247 = arith.constant 1 : i32
        %464 = arith.addi %4, %c1_i32_247 : i32
        %c0_248 = arith.constant 0 : index
        %465 = arith.index_cast %464 : i32 to index
        %c2_249 = arith.constant 2 : index
        %c0_250 = arith.constant 0 : index
        %466 = vector.load %arg2[%c0_248, %465, %c2_249, %c0_250] : memref<1x4x18x18xf32, #tpu.memory_space<vmem>>, vector<1x1x16x16xf32>
        %467 = vector.shape_cast %466 : vector<1x1x16x16xf32> to vector<16x16xf32>
        %468 = vector.broadcast %345 : f32 to vector<16x16xf32>
        %469 = arith.mulf %467, %468 : vector<16x16xf32>
        %470 = arith.addf %463, %469 : vector<16x16xf32>
        %c1_i32_251 = arith.constant 1 : i32
        %471 = arith.addi %4, %c1_i32_251 : i32
        %c0_252 = arith.constant 0 : index
        %472 = arith.index_cast %471 : i32 to index
        %c2_253 = arith.constant 2 : index
        %c1_254 = arith.constant 1 : index
        %473 = vector.load %arg2[%c0_252, %472, %c2_253, %c1_254] : memref<1x4x18x18xf32, #tpu.memory_space<vmem>>, vector<1x1x16x16xf32>
        %474 = vector.shape_cast %473 : vector<1x1x16x16xf32> to vector<16x16xf32>
        %475 = vector.broadcast %351 : f32 to vector<16x16xf32>
        %476 = arith.mulf %474, %475 : vector<16x16xf32>
        %477 = arith.addf %470, %476 : vector<16x16xf32>
        %c1_i32_255 = arith.constant 1 : i32
        %478 = arith.addi %4, %c1_i32_255 : i32
        %c0_256 = arith.constant 0 : index
        %479 = arith.index_cast %478 : i32 to index
        %c2_257 = arith.constant 2 : index
        %c2_258 = arith.constant 2 : index
        %480 = vector.load %arg2[%c0_256, %479, %c2_257, %c2_258] : memref<1x4x18x18xf32, #tpu.memory_space<vmem>>, vector<1x1x16x16xf32>
        %481 = vector.shape_cast %480 : vector<1x1x16x16xf32> to vector<16x16xf32>
        %482 = vector.broadcast %357 : f32 to vector<16x16xf32>
        %483 = arith.mulf %481, %482 : vector<16x16xf32>
        %484 = arith.addf %477, %483 : vector<16x16xf32>
        %c0_259 = arith.constant 0 : index
        %485 = arith.index_cast %arg5 : i32 to index
        %486 = arith.index_cast %249 : i32 to index
        %c0_260 = arith.constant 0 : index
        %c0_261 = arith.constant 0 : index
        %487 = vector.load %arg4[%c0_259, %485, %486, %c0_260, %c0_261] : memref<1x3x4x16x16xf32, #tpu.memory_space<vmem>>, vector<1x1x1x16x16xf32>
        %488 = vector.shape_cast %487 : vector<1x1x1x16x16xf32> to vector<16x16xf32>
        %489 = vector.shape_cast %484 : vector<16x16xf32> to vector<1x1x1x16x16xf32>
        tpu.vector_store %arg4[%c0_259, %485, %486, %c0_260, %c0_261], %489 {strides = array<i32>} : memref<1x3x4x16x16xf32, #tpu.memory_space<vmem>>, vector<1x1x1x16x16xf32>,
      }
      %c2_i32_4 = arith.constant 2 : i32
    }
    %c3_i32_0 = arith.constant 3 : i32
    return
  }
  func.func @transform_0(%arg0: i32, %arg1: i32) -> (i32, i32, i32, i32) {
    %c0_i32 = arith.constant 0 : i32
    %c0_i32_0 = arith.constant 0 : i32
    %c0_i32_1 = arith.constant 0 : i32
    %c0_i32_2 = arith.constant 0 : i32
    return %arg0, %c0_i32, %c0_i32_0, %c0_i32_1 : i32, i32, i32, i32
  }
  func.func @transform_1(%arg0: i32, %arg1: i32) -> (i32, i32) {
    %c0_i32 = arith.constant 0 : i32
    %c0_i32_0 = arith.constant 0 : i32
    %c0_i32_1 = arith.constant 0 : i32
    return %c0_i32, %c0_i32_0 : i32, i32
  }
  func.func @transform_2(%arg0: i32, %arg1: i32) -> (i32, i32, i32, i32, i32) {
    %c0_i32 = arith.constant 0 : i32
    %c0_i32_0 = arith.constant 0 : i32
    %c0_i32_1 = arith.constant 0 : i32
    %c0_i32_2 = arith.constant 0 : i32
    return %arg0, %arg1, %c0_i32, %c0_i32_0, %c0_i32_1 : i32, i32, i32, i32, i32
  }
}

</mosaic_0001>

<llo_original>
// kernel: tpu_custom_call.1
$region0: #{tpu_custom_call.1}
  #allocation0 [shape = 'u32[]', space=smem, size = 0x4, offset = 0x4, fixed_abs, tag = 'smem constant byte address 0x4 - core index']
  #allocation1 [shape = 'u32[144,128]{1,0:T(1,128)}', space=vmem, size = 0x12000, scoped, tag = 'internal scratch']
  %s0 = inlined_call_operand.vmem [shape: f32[2,4,18,18], index: 0, kind: input, shape index: {}]
  %s1 = inlined_call_operand.vmem [shape: f32[3,72], index: 1, kind: input, shape index: {}]
  %s2 = inlined_call_operand.hbm [shape: f32[2,3,4,16,16], index: 2, kind: output, shape index: {}]
  %s3 = sld [smem:[#allocation0]]
  $region59: #{tpu_custom_call.1} parent=0
    _
  %s5 = ssub.s32 1, %s3
  %s6 = scalar_select 0, %s5, %s3
  $region1: #{tpu_custom_call.1} parent=0
    #allocation2 [shape = 'u8[2048]{0}', space=smem, size = 0x800, scoped, tag = 'input window, operand 1, single buffered']
    #allocation3 [shape = 's32[2]{0}', space=sflag, size = 0x8, scoped, tag = 'scoped memory for tpu_custom_call.1']
    #allocation4 [shape = 's32[2]{0}', space=sflag, size = 0x8, scoped, tag = 'scoped memory for tpu_custom_call.1']
    #allocation5 [shape = 'u8[196608]{0}', space=vmem, size = 0x30000, scoped, tag = 'output window, operand 0']
    %7 = vsyncpa [#allocation4], 0
    %8 = vsyncpa [#allocation3], 0
    %s9 = scalar_lea.sflag [#allocation3], 1
    %10 = vsyncpa %s9, 0
    loop: start=0, step=1, limit=4
    $region2: #{tpu_custom_call.1} parent=1 // loop_pre_header
      _
    $region3: #{tpu_custom_call.1} parent=1 // loop_header
      %s12 = sphi 0, %s16
      %p13 = scmp.ge.s32.totalorder %s12, 4
      %s19 = sphi 0, %s31
      %s20 = sphi 0, %s27
      %s21 = sphi 0, %s19
      %s22 = sphi 0, %s20
      %s23 = sphi 0, %s21
      %s24 = sphi 0, %s22
      %s34 = sphi 0, %s36
      %s37 = sphi 0, %s34
      %s38 = sphi 0, %s37
      %s54 = sphi 0, %s38
      %s58 = sphi 0, %s58
      %s60 = sphi 0, %s58
      %s61 = sphi 0, %s60
      %s75 = sphi 0, %s61
      %s83 = sphi 0, %s85
      %s86 = sphi 0, %s83
      %s87 = sphi 0, %s86
      %s103 = sphi 0, %s87
    $region4: #{tpu_custom_call.1} parent=1 // loop_header_branch
      %15 = sbr.rel (%p13) target = $region8
    $region5: #{tpu_custom_call.1} parent=1 // loop_body
      %s17 = ssub.s32 %s12, 1
      %s18 = ssub.s32 %s12, 2
      %s25 = sadd.s32 1, %s20
      %p26 = scmp.ge.s32.totalorder %s25, 1
      %s27 = scalar_select %p26, 0, %s25
      %s28 = sadd.s32 1, %s19
      %s29 = scalar_select %p26, %s28, %s19
      %p30 = scmp.ge.s32.totalorder %s29, 2
      %s31 = scalar_select %p30, 0, %s29
      %s32 = ssub.s32 %s19, %s31
      %p33 = scmp.eq.s32.totalorder %s32, 0
      %s35 = sadd.s32 %s34, 1
      %s36 = scalar_select %p33, %s34, %s35
      %p39 = pneg %p33
      %p40 = scmp.eq.s32.totalorder %s12, 1
      %p41 = por %p39, %p40
      %p42 = scmp.ne.s32.totalorder %s34, %s37
      %p43 = scmp.eq.s32.totalorder %s12, 0
      %p44 = por %p42, %p43
      %p45 = scmp.ne.s32.totalorder %s34, %s37
      %p46 = scmp.eq.s32.totalorder %s17, 1
      %p47 = por %p45, %p46
      %p48 = scmp.ne.s32.totalorder %s37, %s38
      %p49 = scmp.eq.s32.totalorder %s17, 0
      %p50 = por %p48, %p49
      %p51 = scmp.ne.s32.totalorder %s37, %s38
      %p52 = scmp.eq.s32.totalorder %s18, 1
      %p53 = por %p51, %p52
      %p55 = scmp.ne.s32.totalorder %s38, %s54
      %p56 = scmp.eq.s32.totalorder %s18, 0
      %p57 = por %p55, %p56
      %s59 = sadd.s32 %s58, 1
      %p62 = scmp.eq.s32.totalorder %s12, 1
      %p63 = scmp.ne.s32.totalorder %s58, %s60
      %p64 = scmp.eq.s32.totalorder %s12, 0
      %p65 = por %p63, %p64
      %p66 = scmp.ne.s32.totalorder %s58, %s60
      %p67 = scmp.eq.s32.totalorder %s17, 1
      %p68 = por %p66, %p67
      %p69 = scmp.ne.s32.totalorder %s60, %s61
      %p70 = scmp.eq.s32.totalorder %s17, 0
      %p71 = por %p69, %p70
      %p72 = scmp.ne.s32.totalorder %s60, %s61
      %p73 = scmp.eq.s32.totalorder %s18, 1
      %p74 = por %p72, %p73
      %p76 = scmp.ne.s32.totalorder %s61, %s75
      %p77 = scmp.eq.s32.totalorder %s18, 0
      %p78 = por %p76, %p77
      %s79 = ssub.s32 %s19, %s31
      %s80 = ssub.s32 %s20, %s27
      %s81 = sor.u32 %s79, %s80
      %p82 = scmp.eq.s32.totalorder %s81, 0
      %s84 = sadd.s32 %s83, 1
      %s85 = scalar_select %p82, %s83, %s84
      %p88 = pneg %p82
      %p89 = scmp.eq.s32.totalorder %s12, 1
      %p90 = por %p88, %p89
      %p91 = scmp.ne.s32.totalorder %s83, %s86
      %p92 = scmp.eq.s32.totalorder %s12, 0
      %p93 = por %p91, %p92
      %p94 = scmp.ne.s32.totalorder %s83, %s86
      %p95 = scmp.eq.s32.totalorder %s17, 1
      %p96 = por %p94, %p95
      %p97 = scmp.ne.s32.totalorder %s86, %s87
      %p98 = scmp.eq.s32.totalorder %s17, 0
      %p99 = por %p97, %p98
      %p100 = scmp.ne.s32.totalorder %s86, %s87
      %p101 = scmp.eq.s32.totalorder %s18, 1
      %p102 = por %p100, %p101
      %p104 = scmp.ne.s32.totalorder %s87, %s103
      %p105 = scmp.eq.s32.totalorder %s18, 0
      %p106 = por %p104, %p105
      %p107 = scmp.le.s32.totalorder 1, %s12
      %p108 = scmp.lt.s32.totalorder %s12, 3
      %p109 = pnand %p107, %p108
      %p110 = pneg %p109
      // Predicated region
      $region9: #{tpu_custom_call.1} parent=5 // pred_check
        _
      $region10: #{tpu_custom_call.1} parent=5 // pred_check_branch
        %112 = sbr.rel (%p109) target = $region12
      $region11: #{tpu_custom_call.1} parent=5 // pred_region
        %s113 = ssub.s32 %s12, 1
        // Predicated region
        $region13: #{tpu_custom_call.1} parent=11 // pred_check
          %p114 = pneg %p71
        $region14: #{tpu_custom_call.1} parent=11 // pred_check_branch
          %116 = sbr.rel (%p114) target = $region16
        $region15: #{tpu_custom_call.1} parent=11 // pred_region
          %s118 = ssub.s32 64, 64
          %119 = vsyncadd [#allocation4], %s118
          %s121 = sshll.u32 %s1, 4
          %s122 = int_to_ptr.vmem [resolvable:$true] %s121
          %124 = dma.vmem_to_smem %s122, 64, [#allocation2], [#allocation4]
        $region16: #{tpu_custom_call.1} parent=11 // pred_fallthru
          _
      $region12: #{tpu_custom_call.1} parent=5 // pred_fallthru
        _
      %p125 = scmp.lt.s32.totalorder %s12, 2
      // Predicated region
      $region17: #{tpu_custom_call.1} parent=5 // pred_check
        %p126 = pneg %p125
      $region18: #{tpu_custom_call.1} parent=5 // pred_check_branch
        %128 = sbr.rel (%p126) target = $region20
      $region19: #{tpu_custom_call.1} parent=5 // pred_region
        // Predicated region
        $region21: #{tpu_custom_call.1} parent=19 // pred_check
          %p129 = pneg %p44
        $region22: #{tpu_custom_call.1} parent=19 // pred_check_branch
          %131 = sbr.rel (%p129) target = $region24
        $region23: #{tpu_custom_call.1} parent=19 // pred_region
          %p132 = scmp.lt.s32.totalorder %s19, 1
          %s133 = scalar_select %p132, %s19, 1
          %s134 = smul.addr %s133, 12
          %s135 = smul.addr %s134, 8
          %s136 = scalar_lea.vmem %s0, %s135
        $region24: #{tpu_custom_call.1} parent=19 // pred_fallthru
          _
      $region20: #{tpu_custom_call.1} parent=5 // pred_fallthru
        _
      %p137 = scmp.le.s32.totalorder 1, %s12
      %p138 = scmp.lt.s32.totalorder %s12, 3
      %p139 = pnand %p137, %p138
      %p140 = pneg %p139
      // Predicated region
      $region25: #{tpu_custom_call.1} parent=5 // pred_check
        _
      $region26: #{tpu_custom_call.1} parent=5 // pred_check_branch
        %142 = sbr.rel (%p139) target = $region28
      $region27: #{tpu_custom_call.1} parent=5 // pred_region
        %s143 = ssub.s32 %s12, 1
        // Predicated region
        $region29: #{tpu_custom_call.1} parent=27 // pred_check
          %p144 = pneg %p71
        $region30: #{tpu_custom_call.1} parent=27 // pred_check_branch
          %146 = sbr.rel (%p144) target = $region32
        $region31: #{tpu_custom_call.1} parent=27 // pred_region
          %147 = dma.done [#allocation4], 64
        $region32: #{tpu_custom_call.1} parent=27 // pred_fallthru
          _
        %148 = sfence
        %p149 = scmp.lt.s32.totalorder %s21, 1
        %s150 = scalar_select %p149, %s21, 1
        %s151 = smul.addr %s150, 12
        %s152 = smul.addr %s151, 8
        %s153 = scalar_lea.vmem %s0, %s152
        %p154 = pneg %p50
        %p155 = pneg %p47
        %p156 = pneg %p71
        %p157 = pneg %p68
        %p158 = pneg %p99
        %p159 = pneg %p96
        %s160 = sand.u32 %s86, 1
        %s161 = scalar_lea.sflag [#allocation3], %s160
        %s162 = sand.u32 %s86, 1
        %s163 = smul.addr %s162, 192
        %s164 = scalar_lea.vmem [#allocation5], %s163
        %p165 = scmp.lt.s32.totalorder %s21, 1
        %s166 = scalar_select %p165, %s21, 1
        %s167 = smul.addr %s166, 12
        %s168 = smul.addr %s167, 8
        %s169 = scalar_lea.vmem %s0, %s168
        %s170 = smul.u32 3, %s22
        loop: start=0, step=1, limit=3
        $region33: #{tpu_custom_call.1} parent=27 // loop_pre_header
          _
        $region34: #{tpu_custom_call.1} parent=27 // loop_header
          %s172 = sphi 0, %s176
          %p173 = scmp.ge.s32.totalorder %s172, 3
        $region35: #{tpu_custom_call.1} parent=27 // loop_header_branch
          %175 = sbr.rel (%p173) target = $region39
        $region36: #{tpu_custom_call.1} parent=27 // loop_body
          %s177 = smul.u32 %s22, 3
          %s178 = sadd.s32 %s177, %s172
          loop: start=0, step=1, limit=2
          $region40: #{tpu_custom_call.1} parent=36 // loop_pre_header
            _
          $region41: #{tpu_custom_call.1} parent=36 // loop_header
            %s180 = sphi 0, %s184
            %p181 = scmp.ge.s32.totalorder %s180, 2
          $region42: #{tpu_custom_call.1} parent=36 // loop_header_branch
            %183 = sbr.rel (%p181) target = $region46
          $region43: #{tpu_custom_call.1} parent=36 // loop_body
            %s185 = smul.u32 %s180, 2
            %s186 = smul.u32 %s180, 36
            %s187 = sshra.s32 %s186, 7
            %s188 = sand.u32 %s186, 127
            %s189 = sadd.s32 %s187, %s178
            %s190 = smul.u32 %s189, 128
            %s191 = sshra.s32 %s186, 7
            %s192 = sand.u32 %s186, 127
            %s193 = sadd.s32 %s190, %s192
            %s194 = sld [smem:[#allocation2 + %s193]]
            %s195 = sadd.s32 %s186, 1
            %s196 = sshra.s32 %s195, 7
            %s197 = sand.u32 %s195, 127
            %s198 = sadd.s32 %s196, %s178
            %s199 = smul.u32 %s198, 128
            %s200 = sshra.s32 %s195, 7
            %s201 = sand.u32 %s195, 127
            %s202 = sadd.s32 %s199, %s201
            %s203 = sld [smem:[#allocation2 + %s202]]
            %s204 = sadd.s32 %s186, 2
            %s205 = sshra.s32 %s204, 7
            %s206 = sand.u32 %s204, 127
            %s207 = sadd.s32 %s205, %s178
            %s208 = smul.u32 %s207, 128
            %s209 = sshra.s32 %s204, 7
            %s210 = sand.u32 %s204, 127
            %s211 = sadd.s32 %s208, %s210
            %s212 = sld [smem:[#allocation2 + %s211]]
            %s213 = sadd.s32 %s186, 3
            %s214 = sshra.s32 %s213, 7
            %s215 = sand.u32 %s213, 127
            %s216 = sadd.s32 %s214, %s178
            %s217 = smul.u32 %s216, 128
            %s218 = sshra.s32 %s213, 7
            %s219 = sand.u32 %s213, 127
            %s220 = sadd.s32 %s217, %s219
            %s221 = sld [smem:[#allocation2 + %s220]]
            %s222 = sadd.s32 %s186, 4
            %s223 = sshra.s32 %s222, 7
            %s224 = sand.u32 %s222, 127
            %s225 = sadd.s32 %s223, %s178
            %s226 = smul.u32 %s225, 128
            %s227 = sshra.s32 %s222, 7
            %s228 = sand.u32 %s222, 127
            %s229 = sadd.s32 %s226, %s228
            %s230 = sld [smem:[#allocation2 + %s229]]
            %s231 = sadd.s32 %s186, 5
            %s232 = sshra.s32 %s231, 7
            %s233 = sand.u32 %s231, 127
            %s234 = sadd.s32 %s232, %s178
            %s235 = smul.u32 %s234, 128
            %s236 = sshra.s32 %s231, 7
            %s237 = sand.u32 %s231, 127
            %s238 = sadd.s32 %s235, %s237
            %s239 = sld [smem:[#allocation2 + %s238]]
            %s240 = sadd.s32 %s186, 6
            %s241 = sshra.s32 %s240, 7
            %s242 = sand.u32 %s240, 127
            %s243 = sadd.s32 %s241, %s178
            %s244 = smul.u32 %s243, 128
            %s245 = sshra.s32 %s240, 7
            %s246 = sand.u32 %s240, 127
            %s247 = sadd.s32 %s244, %s246
            %s248 = sld [smem:[#allocation2 + %s247]]
            %s249 = sadd.s32 %s186, 7
            %s250 = sshra.s32 %s249, 7
            %s251 = sand.u32 %s249, 127
            %s252 = sadd.s32 %s250, %s178
            %s253 = smul.u32 %s252, 128
            %s254 = sshra.s32 %s249, 7
            %s255 = sand.u32 %s249, 127
            %s256 = sadd.s32 %s253, %s255
            %s257 = sld [smem:[#allocation2 + %s256]]
            %s258 = sadd.s32 %s186, 8
            %s259 = sshra.s32 %s258, 7
            %s260 = sand.u32 %s258, 127
            %s261 = sadd.s32 %s259, %s178
            %s262 = smul.u32 %s261, 128
            %s263 = sshra.s32 %s258, 7
            %s264 = sand.u32 %s258, 127
            %s265 = sadd.s32 %s262, %s264
            %s266 = sld [smem:[#allocation2 + %s265]]
            %s267 = sadd.s32 %s186, 9
            %s268 = sshra.s32 %s267, 7
            %s269 = sand.u32 %s267, 127
            %s270 = sadd.s32 %s268, %s178
            %s271 = smul.u32 %s270, 128
            %s272 = sshra.s32 %s267, 7
            %s273 = sand.u32 %s267, 127
            %s274 = sadd.s32 %s271, %s273
            %s275 = sld [smem:[#allocation2 + %s274]]
            %s276 = sadd.s32 %s186, 10
            %s277 = sshra.s32 %s276, 7
            %s278 = sand.u32 %s276, 127
            %s279 = sadd.s32 %s277, %s178
            %s280 = smul.u32 %s279, 128
            %s281 = sshra.s32 %s276, 7
            %s282 = sand.u32 %s276, 127
            %s283 = sadd.s32 %s280, %s282
            %s284 = sld [smem:[#allocation2 + %s283]]
            %s285 = sadd.s32 %s186, 11
            %s286 = sshra.s32 %s285, 7
            %s287 = sand.u32 %s285, 127
            %s288 = sadd.s32 %s286, %s178
            %s289 = smul.u32 %s288, 128
            %s290 = sshra.s32 %s285, 7
            %s291 = sand.u32 %s285, 127
            %s292 = sadd.s32 %s289, %s291
            %s293 = sld [smem:[#allocation2 + %s292]]
            %s294 = sadd.s32 %s186, 12
            %s295 = sshra.s32 %s294, 7
            %s296 = sand.u32 %s294, 127
            %s297 = sadd.s32 %s295, %s178
            %s298 = smul.u32 %s297, 128
            %s299 = sshra.s32 %s294, 7
            %s300 = sand.u32 %s294, 127
            %s301 = sadd.s32 %s298, %s300
            %s302 = sld [smem:[#allocation2 + %s301]]
            %s303 = sadd.s32 %s186, 13
            %s304 = sshra.s32 %s303, 7
            %s305 = sand.u32 %s303, 127
            %s306 = sadd.s32 %s304, %s178
            %s307 = smul.u32 %s306, 128
            %s308 = sshra.s32 %s303, 7
            %s309 = sand.u32 %s303, 127
            %s310 = sadd.s32 %s307, %s309
            %s311 = sld [smem:[#allocation2 + %s310]]
            %s312 = sadd.s32 %s186, 14
            %s313 = sshra.s32 %s312, 7
            %s314 = sand.u32 %s312, 127
            %s315 = sadd.s32 %s313, %s178
            %s316 = smul.u32 %s315, 128
            %s317 = sshra.s32 %s312, 7
            %s318 = sand.u32 %s312, 127
            %s319 = sadd.s32 %s316, %s318
            %s320 = sld [smem:[#allocation2 + %s319]]
            %s321 = sadd.s32 %s186, 15
            %s322 = sshra.s32 %s321, 7
            %s323 = sand.u32 %s321, 127
            %s324 = sadd.s32 %s322, %s178
            %s325 = smul.u32 %s324, 128
            %s326 = sshra.s32 %s321, 7
            %s327 = sand.u32 %s321, 127
            %s328 = sadd.s32 %s325, %s327
            %s329 = sld [smem:[#allocation2 + %s328]]
            %s330 = sadd.s32 %s186, 16
            %s331 = sshra.s32 %s330, 7
            %s332 = sand.u32 %s330, 127
            %s333 = sadd.s32 %s331, %s178
            %s334 = smul.u32 %s333, 128
            %s335 = sshra.s32 %s330, 7
            %s336 = sand.u32 %s330, 127
            %s337 = sadd.s32 %s334, %s336
            %s338 = sld [smem:[#allocation2 + %s337]]
            %s339 = sadd.s32 %s186, 17
            %s340 = sshra.s32 %s339, 7
            %s341 = sand.u32 %s339, 127
            %s342 = sadd.s32 %s340, %s178
            %s343 = smul.u32 %s342, 128
            %s344 = sshra.s32 %s339, 7
            %s345 = sand.u32 %s339, 127
            %s346 = sadd.s32 %s343, %s345
            %s347 = sld [smem:[#allocation2 + %s346]]
            %s348 = smul.u32 %s185, 24
            %s349 = scalar_lea.vmem %s169, %s348
            %v350 = vld [vmem:[%s349] sm:$0xff]
            %v351 = vld [vmem:[%s349 + $0x8] sm:$0xff]
            %v352 = vstv %s194
            %v353 = vmul.f32 %v350, %v352
            %v354 = vmul.f32 %v351, %v352
            %v355 = vadd.f32 %v353, 0.0
            %v356 = vadd.f32 %v354, 0.0
            %v357 = vstv %s203
            %v358 = vmul.f32 %v350, %v357
            %v359 = vmul.f32 %v351, %v357
            %362 = vrot.lane.b32.xlu0 %v358, 127
            %v363 = vpop.permute.xlu0 %362
            %364 = vrot.lane.b32.xlu0 %v359, 127
            %v365 = vpop.permute.xlu0 %364
            %v368 = vadd.f32 %v355, %v363
            %v369 = vadd.f32 %v356, %v365
            %v370 = vstv %s212
            %v371 = vmul.f32 %v350, %v370
            %v372 = vmul.f32 %v351, %v370
            %375 = vrot.lane.b32.xlu0 %v371, 126
            %v376 = vpop.permute.xlu0 %375
            %377 = vrot.lane.b32.xlu0 %v372, 126
            %v378 = vpop.permute.xlu0 %377
            %v381 = vadd.f32 %v368, %v376
            %v382 = vadd.f32 %v369, %v378
            %v383 = vld [vmem:[%s349 + $0x1] sm:$0xff]
            %v384 = vld [vmem:[%s349 + $0x9] sm:$0xff]
            %v385 = vstv %s221
            %v386 = vmul.f32 %v383, %v385
            %v387 = vmul.f32 %v384, %v385
            %v388 = vadd.f32 %v381, %v386
            %v389 = vadd.f32 %v382, %v387
            %v390 = vstv %s230
            %v391 = vmul.f32 %v383, %v390
            %v392 = vmul.f32 %v384, %v390
            %395 = vrot.lane.b32.xlu0 %v391, 127
            %v396 = vpop.permute.xlu0 %395
            %397 = vrot.lane.b32.xlu0 %v392, 127
            %v398 = vpop.permute.xlu0 %397
            %v401 = vadd.f32 %v388, %v396
            %v402 = vadd.f32 %v389, %v398
            %v403 = vstv %s239
            %v404 = vmul.f32 %v383, %v403
            %v405 = vmul.f32 %v384, %v403
            %408 = vrot.lane.b32.xlu0 %v404, 126
            %v409 = vpop.permute.xlu0 %408
            %410 = vrot.lane.b32.xlu0 %v405, 126
            %v411 = vpop.permute.xlu0 %410
            %v414 = vadd.f32 %v401, %v409
            %v415 = vadd.f32 %v402, %v411
            %v416 = vld [vmem:[%s349 + $0x2] sm:$0xff]
            %v417 = vld [vmem:[%s349 + $0xa] sm:$0xff]
            %v418 = vstv %s248
            %v419 = vmul.f32 %v416, %v418
            %v420 = vmul.f32 %v417, %v418
            %v421 = vadd.f32 %v414, %v419
            %v422 = vadd.f32 %v415, %v420
            %v423 = vstv %s257
            %v424 = vmul.f32 %v416, %v423
            %v425 = vmul.f32 %v417, %v423
            %428 = vrot.lane.b32.xlu0 %v424, 127
            %v429 = vpop.permute.xlu0 %428
            %430 = vrot.lane.b32.xlu0 %v425, 127
            %v431 = vpop.permute.xlu0 %430
            %v434 = vadd.f32 %v421, %v429
            %v435 = vadd.f32 %v422, %v431
            %v436 = vstv %s266
            %v437 = vmul.f32 %v416, %v436
            %v438 = vmul.f32 %v417, %v436
            %441 = vrot.lane.b32.xlu0 %v437, 126
            %v442 = vpop.permute.xlu0 %441
            %443 = vrot.lane.b32.xlu0 %v438, 126
            %v444 = vpop.permute.xlu0 %443
            %v447 = vadd.f32 %v434, %v442
            %v448 = vadd.f32 %v435, %v444
            %s449 = sadd.s32 %s185, 1
            %s450 = smul.u32 %s449, 24
            %s451 = scalar_lea.vmem %s169, %s450
            %v452 = vld [vmem:[%s451] sm:$0xff]
            %v453 = vld [vmem:[%s451 + $0x8] sm:$0xff]
            %v454 = vstv %s275
            %v455 = vmul.f32 %v452, %v454
            %v456 = vmul.f32 %v453, %v454
            %v457 = vadd.f32 %v447, %v455
            %v458 = vadd.f32 %v448, %v456
            %v459 = vstv %s284
            %v460 = vmul.f32 %v452, %v459
            %v461 = vmul.f32 %v453, %v459
            %464 = vrot.lane.b32.xlu0 %v460, 127
            %v465 = vpop.permute.xlu0 %464
            %466 = vrot.lane.b32.xlu0 %v461, 127
            %v467 = vpop.permute.xlu0 %466
            %v470 = vadd.f32 %v457, %v465
            %v471 = vadd.f32 %v458, %v467
            %v472 = vstv %s293
            %v473 = vmul.f32 %v452, %v472
            %v474 = vmul.f32 %v453, %v472
            %477 = vrot.lane.b32.xlu0 %v473, 126
            %v478 = vpop.permute.xlu0 %477
            %479 = vrot.lane.b32.xlu0 %v474, 126
            %v480 = vpop.permute.xlu0 %479
            %v483 = vadd.f32 %v470, %v478
            %v484 = vadd.f32 %v471, %v480
            %v485 = vld [vmem:[%s451 + $0x1] sm:$0xff]
            %v486 = vld [vmem:[%s451 + $0x9] sm:$0xff]
            %v487 = vstv %s302
            %v488 = vmul.f32 %v485, %v487
            %v489 = vmul.f32 %v486, %v487
            %v490 = vadd.f32 %v483, %v488
            %v491 = vadd.f32 %v484, %v489
            %v492 = vstv %s311
            %v493 = vmul.f32 %v485, %v492
            %v494 = vmul.f32 %v486, %v492
            %497 = vrot.lane.b32.xlu0 %v493, 127
            %v498 = vpop.permute.xlu0 %497
            %499 = vrot.lane.b32.xlu0 %v494, 127
            %v500 = vpop.permute.xlu0 %499
            %v503 = vadd.f32 %v490, %v498
            %v504 = vadd.f32 %v491, %v500
            %v505 = vstv %s320
            %v506 = vmul.f32 %v485, %v505
            %v507 = vmul.f32 %v486, %v505
            %510 = vrot.lane.b32.xlu0 %v506, 126
            %v511 = vpop.permute.xlu0 %510
            %512 = vrot.lane.b32.xlu0 %v507, 126
            %v513 = vpop.permute.xlu0 %512
            %v516 = vadd.f32 %v503, %v511
            %v517 = vadd.f32 %v504, %v513
            %v518 = vld [vmem:[%s451 + $0x2] sm:$0xff]
            %v519 = vld [vmem:[%s451 + $0xa] sm:$0xff]
            %v520 = vstv %s329
            %v521 = vmul.f32 %v518, %v520
            %v522 = vmul.f32 %v519, %v520
            %v523 = vadd.f32 %v516, %v521
            %v524 = vadd.f32 %v517, %v522
            %v525 = vstv %s338
            %v526 = vmul.f32 %v518, %v525
            %v527 = vmul.f32 %v519, %v525
            %530 = vrot.lane.b32.xlu0 %v526, 127
            %v531 = vpop.permute.xlu0 %530
            %532 = vrot.lane.b32.xlu0 %v527, 127
            %v533 = vpop.permute.xlu0 %532
            %v536 = vadd.f32 %v523, %v531
            %v537 = vadd.f32 %v524, %v533
            %v538 = vstv %s347
            %v539 = vmul.f32 %v518, %v538
            %v540 = vmul.f32 %v519, %v538
            %543 = vrot.lane.b32.xlu0 %v539, 126
            %v544 = vpop.permute.xlu0 %543
            %545 = vrot.lane.b32.xlu0 %v540, 126
            %v546 = vpop.permute.xlu0 %545
            %v549 = vadd.f32 %v536, %v544
            %v550 = vadd.f32 %v537, %v546
            %s551 = smul.u32 %s185, 16
            %s552 = smul.u32 %s172, 64
            %s553 = sadd.s32 %s551, %s552
            %s554 = scalar_lea.vmem %s164, %s553 [#allocation5]
            %vm555 = vcmask 130048
            %556 = vst.msk [vmem:[%s554] sm:$0xff] %vm555, %v549
            %557 = vst.msk [vmem:[%s554 + $0x8] sm:$0xff] %vm555, %v550
            %s558 = sadd.s32 %s186, 18
            %s559 = sshra.s32 %s558, 7
            %s560 = sand.u32 %s558, 127
            %s561 = sadd.s32 %s559, %s178
            %s562 = smul.u32 %s561, 128
            %s563 = sshra.s32 %s558, 7
            %s564 = sand.u32 %s558, 127
            %s565 = sadd.s32 %s562, %s564
            %s566 = sld [smem:[#allocation2 + %s565]]
            %s567 = sadd.s32 %s186, 19
            %s568 = sshra.s32 %s567, 7
            %s569 = sand.u32 %s567, 127
            %s570 = sadd.s32 %s568, %s178
            %s571 = smul.u32 %s570, 128
            %s572 = sshra.s32 %s567, 7
            %s573 = sand.u32 %s567, 127
            %s574 = sadd.s32 %s571, %s573
            %s575 = sld [smem:[#allocation2 + %s574]]
            %s576 = sadd.s32 %s186, 20
            %s577 = sshra.s32 %s576, 7
            %s578 = sand.u32 %s576, 127
            %s579 = sadd.s32 %s577, %s178
            %s580 = smul.u32 %s579, 128
            %s581 = sshra.s32 %s576, 7
            %s582 = sand.u32 %s576, 127
            %s583 = sadd.s32 %s580, %s582
            %s584 = sld [smem:[#allocation2 + %s583]]
            %s585 = sadd.s32 %s186, 21
            %s586 = sshra.s32 %s585, 7
            %s587 = sand.u32 %s585, 127
            %s588 = sadd.s32 %s586, %s178
            %s589 = smul.u32 %s588, 128
            %s590 = sshra.s32 %s585, 7
            %s591 = sand.u32 %s585, 127
            %s592 = sadd.s32 %s589, %s591
            %s593 = sld [smem:[#allocation2 + %s592]]
            %s594 = sadd.s32 %s186, 22
            %s595 = sshra.s32 %s594, 7
            %s596 = sand.u32 %s594, 127
            %s597 = sadd.s32 %s595, %s178
            %s598 = smul.u32 %s597, 128
            %s599 = sshra.s32 %s594, 7
            %s600 = sand.u32 %s594, 127
            %s601 = sadd.s32 %s598, %s600
            %s602 = sld [smem:[#allocation2 + %s601]]
            %s603 = sadd.s32 %s186, 23
            %s604 = sshra.s32 %s603, 7
            %s605 = sand.u32 %s603, 127
            %s606 = sadd.s32 %s604, %s178
            %s607 = smul.u32 %s606, 128
            %s608 = sshra.s32 %s603, 7
            %s609 = sand.u32 %s603, 127
            %s610 = sadd.s32 %s607, %s609
            %s611 = sld [smem:[#allocation2 + %s610]]
            %s612 = sadd.s32 %s186, 24
            %s613 = sshra.s32 %s612, 7
            %s614 = sand.u32 %s612, 127
            %s615 = sadd.s32 %s613, %s178
            %s616 = smul.u32 %s615, 128
            %s617 = sshra.s32 %s612, 7
            %s618 = sand.u32 %s612, 127
            %s619 = sadd.s32 %s616, %s618
            %s620 = sld [smem:[#allocation2 + %s619]]
            %s621 = sadd.s32 %s186, 25
            %s622 = sshra.s32 %s621, 7
            %s623 = sand.u32 %s621, 127
            %s624 = sadd.s32 %s622, %s178
            %s625 = smul.u32 %s624, 128
            %s626 = sshra.s32 %s621, 7
            %s627 = sand.u32 %s621, 127
            %s628 = sadd.s32 %s625, %s627
            %s629 = sld [smem:[#allocation2 + %s628]]
            %s630 = sadd.s32 %s186, 26
            %s631 = sshra.s32 %s630, 7
            %s632 = sand.u32 %s630, 127
            %s633 = sadd.s32 %s631, %s178
            %s634 = smul.u32 %s633, 128
            %s635 = sshra.s32 %s630, 7
            %s636 = sand.u32 %s630, 127
            %s637 = sadd.s32 %s634, %s636
            %s638 = sld [smem:[#allocation2 + %s637]]
            %s639 = sadd.s32 %s186, 27
            %s640 = sshra.s32 %s639, 7
            %s641 = sand.u32 %s639, 127
            %s642 = sadd.s32 %s640, %s178
            %s643 = smul.u32 %s642, 128
            %s644 = sshra.s32 %s639, 7
            %s645 = sand.u32 %s639, 127
            %s646 = sadd.s32 %s643, %s645
            %s647 = sld [smem:[#allocation2 + %s646]]
            %s648 = sadd.s32 %s186, 28
            %s649 = sshra.s32 %s648, 7
            %s650 = sand.u32 %s648, 127
            %s651 = sadd.s32 %s649, %s178
            %s652 = smul.u32 %s651, 128
            %s653 = sshra.s32 %s648, 7
            %s654 = sand.u32 %s648, 127
            %s655 = sadd.s32 %s652, %s654
            %s656 = sld [smem:[#allocation2 + %s655]]
            %s657 = sadd.s32 %s186, 29
            %s658 = sshra.s32 %s657, 7
            %s659 = sand.u32 %s657, 127
            %s660 = sadd.s32 %s658, %s178
            %s661 = smul.u32 %s660, 128
            %s662 = sshra.s32 %s657, 7
            %s663 = sand.u32 %s657, 127
            %s664 = sadd.s32 %s661, %s663
            %s665 = sld [smem:[#allocation2 + %s664]]
            %s666 = sadd.s32 %s186, 30
            %s667 = sshra.s32 %s666, 7
            %s668 = sand.u32 %s666, 127
            %s669 = sadd.s32 %s667, %s178
            %s670 = smul.u32 %s669, 128
            %s671 = sshra.s32 %s666, 7
            %s672 = sand.u32 %s666, 127
            %s673 = sadd.s32 %s670, %s672
            %s674 = sld [smem:[#allocation2 + %s673]]
            %s675 = sadd.s32 %s186, 31
            %s676 = sshra.s32 %s675, 7
            %s677 = sand.u32 %s675, 127
            %s678 = sadd.s32 %s676, %s178
            %s679 = smul.u32 %s678, 128
            %s680 = sshra.s32 %s675, 7
            %s681 = sand.u32 %s675, 127
            %s682 = sadd.s32 %s679, %s681
            %s683 = sld [smem:[#allocation2 + %s682]]
            %s684 = sadd.s32 %s186, 32
            %s685 = sshra.s32 %s684, 7
            %s686 = sand.u32 %s684, 127
            %s687 = sadd.s32 %s685, %s178
            %s688 = smul.u32 %s687, 128
            %s689 = sshra.s32 %s684, 7
            %s690 = sand.u32 %s684, 127
            %s691 = sadd.s32 %s688, %s690
            %s692 = sld [smem:[#allocation2 + %s691]]
            %s693 = sadd.s32 %s186, 33
            %s694 = sshra.s32 %s693, 7
            %s695 = sand.u32 %s693, 127
            %s696 = sadd.s32 %s694, %s178
            %s697 = smul.u32 %s696, 128
            %s698 = sshra.s32 %s693, 7
            %s699 = sand.u32 %s693, 127
            %s700 = sadd.s32 %s697, %s699
            %s701 = sld [smem:[#allocation2 + %s700]]
            %s702 = sadd.s32 %s186, 34
            %s703 = sshra.s32 %s702, 7
            %s704 = sand.u32 %s702, 127
            %s705 = sadd.s32 %s703, %s178
            %s706 = smul.u32 %s705, 128
            %s707 = sshra.s32 %s702, 7
            %s708 = sand.u32 %s702, 127
            %s709 = sadd.s32 %s706, %s708
            %s710 = sld [smem:[#allocation2 + %s709]]
            %s711 = sadd.s32 %s186, 35
            %s712 = sshra.s32 %s711, 7
            %s713 = sand.u32 %s711, 127
            %s714 = sadd.s32 %s712, %s178
            %s715 = smul.u32 %s714, 128
            %s716 = sshra.s32 %s711, 7
            %s717 = sand.u32 %s711, 127
            %s718 = sadd.s32 %s715, %s717
            %s719 = sld [smem:[#allocation2 + %s718]]
            %v720 = vld [vmem:[%s349] sm:$0xff]
            %v721 = vld [vmem:[%s349 + $0x8] sm:$0xff]
            %v722 = vstv %s566
            %v723 = vmul.f32 %v720, %v722
            %v724 = vmul.f32 %v721, %v722
            %v725 = vadd.f32 %v723, 0.0
            %v726 = vadd.f32 %v724, 0.0
            %v727 = vstv %s575
            %v728 = vmul.f32 %v720, %v727
            %v729 = vmul.f32 %v721, %v727
            %732 = vrot.lane.b32.xlu0 %v728, 127
            %v733 = vpop.permute.xlu0 %732
            %734 = vrot.lane.b32.xlu0 %v729, 127
            %v735 = vpop.permute.xlu0 %734
            %v738 = vadd.f32 %v725, %v733
            %v739 = vadd.f32 %v726, %v735
            %v740 = vstv %s584
            %v741 = vmul.f32 %v720, %v740
            %v742 = vmul.f32 %v721, %v740
            %745 = vrot.lane.b32.xlu0 %v741, 126
            %v746 = vpop.permute.xlu0 %745
            %747 = vrot.lane.b32.xlu0 %v742, 126
            %v748 = vpop.permute.xlu0 %747
            %v751 = vadd.f32 %v738, %v746
            %v752 = vadd.f32 %v739, %v748
            %v753 = vld [vmem:[%s349 + $0x1] sm:$0xff]
            %v754 = vld [vmem:[%s349 + $0x9] sm:$0xff]
            %v755 = vstv %s593
            %v756 = vmul.f32 %v753, %v755
            %v757 = vmul.f32 %v754, %v755
            %v758 = vadd.f32 %v751, %v756
            %v759 = vadd.f32 %v752, %v757
            %v760 = vstv %s602
            %v761 = vmul.f32 %v753, %v760
            %v762 = vmul.f32 %v754, %v760
            %765 = vrot.lane.b32.xlu0 %v761, 127
            %v766 = vpop.permute.xlu0 %765
            %767 = vrot.lane.b32.xlu0 %v762, 127
            %v768 = vpop.permute.xlu0 %767
            %v771 = vadd.f32 %v758, %v766
            %v772 = vadd.f32 %v759, %v768
            %v773 = vstv %s611
            %v774 = vmul.f32 %v753, %v773
            %v775 = vmul.f32 %v754, %v773
            %778 = vrot.lane.b32.xlu0 %v774, 126
            %v779 = vpop.permute.xlu0 %778
            %780 = vrot.lane.b32.xlu0 %v775, 126
            %v781 = vpop.permute.xlu0 %780
            %v784 = vadd.f32 %v771, %v779
            %v785 = vadd.f32 %v772, %v781
            %v786 = vld [vmem:[%s349 + $0x2] sm:$0xff]
            %v787 = vld [vmem:[%s349 + $0xa] sm:$0xff]
            %v788 = vstv %s620
            %v789 = vmul.f32 %v786, %v788
            %v790 = vmul.f32 %v787, %v788
            %v791 = vadd.f32 %v784, %v789
            %v792 = vadd.f32 %v785, %v790
            %v793 = vstv %s629
            %v794 = vmul.f32 %v786, %v793
            %v795 = vmul.f32 %v787, %v793
            %798 = vrot.lane.b32.xlu0 %v794, 127
            %v799 = vpop.permute.xlu0 %798
            %800 = vrot.lane.b32.xlu0 %v795, 127
            %v801 = vpop.permute.xlu0 %800
            %v804 = vadd.f32 %v791, %v799
            %v805 = vadd.f32 %v792, %v801
            %v806 = vstv %s638
            %v807 = vmul.f32 %v786, %v806
            %v808 = vmul.f32 %v787, %v806
            %811 = vrot.lane.b32.xlu0 %v807, 126
            %v812 = vpop.permute.xlu0 %811
            %813 = vrot.lane.b32.xlu0 %v808, 126
            %v814 = vpop.permute.xlu0 %813
            %v817 = vadd.f32 %v804, %v812
            %v818 = vadd.f32 %v805, %v814
            %v819 = vld [vmem:[%s451] sm:$0xff]
            %v820 = vld [vmem:[%s451 + $0x8] sm:$0xff]
            %v821 = vstv %s647
            %v822 = vmul.f32 %v819, %v821
            %v823 = vmul.f32 %v820, %v821
            %v824 = vadd.f32 %v817, %v822
            %v825 = vadd.f32 %v818, %v823
            %v826 = vstv %s656
            %v827 = vmul.f32 %v819, %v826
            %v828 = vmul.f32 %v820, %v826
            %831 = vrot.lane.b32.xlu0 %v827, 127
            %v832 = vpop.permute.xlu0 %831
            %833 = vrot.lane.b32.xlu0 %v828, 127
            %v834 = vpop.permute.xlu0 %833
            %v837 = vadd.f32 %v824, %v832
            %v838 = vadd.f32 %v825, %v834
            %v839 = vstv %s665
            %v840 = vmul.f32 %v819, %v839
            %v841 = vmul.f32 %v820, %v839
            %844 = vrot.lane.b32.xlu0 %v840, 126
            %v845 = vpop.permute.xlu0 %844
            %846 = vrot.lane.b32.xlu0 %v841, 126
            %v847 = vpop.permute.xlu0 %846
            %v850 = vadd.f32 %v837, %v845
            %v851 = vadd.f32 %v838, %v847
            %v852 = vld [vmem:[%s451 + $0x1] sm:$0xff]
            %v853 = vld [vmem:[%s451 + $0x9] sm:$0xff]
            %v854 = vstv %s674
            %v855 = vmul.f32 %v852, %v854
            %v856 = vmul.f32 %v853, %v854
            %v857 = vadd.f32 %v850, %v855
            %v858 = vadd.f32 %v851, %v856
            %v859 = vstv %s683
            %v860 = vmul.f32 %v852, %v859
            %v861 = vmul.f32 %v853, %v859
            %864 = vrot.lane.b32.xlu0 %v860, 127
            %v865 = vpop.permute.xlu0 %864
            %866 = vrot.lane.b32.xlu0 %v861, 127
            %v867 = vpop.permute.xlu0 %866
            %v870 = vadd.f32 %v857, %v865
            %v871 = vadd.f32 %v858, %v867
            %v872 = vstv %s692
            %v873 = vmul.f32 %v852, %v872
            %v874 = vmul.f32 %v853, %v872
            %877 = vrot.lane.b32.xlu0 %v873, 126
            %v878 = vpop.permute.xlu0 %877
            %879 = vrot.lane.b32.xlu0 %v874, 126
            %v880 = vpop.permute.xlu0 %879
            %v883 = vadd.f32 %v870, %v878
            %v884 = vadd.f32 %v871, %v880
            %v885 = vld [vmem:[%s451 + $0x2] sm:$0xff]
            %v886 = vld [vmem:[%s451 + $0xa] sm:$0xff]
            %v887 = vstv %s701
            %v888 = vmul.f32 %v885, %v887
            %v889 = vmul.f32 %v886, %v887
            %v890 = vadd.f32 %v883, %v888
            %v891 = vadd.f32 %v884, %v889
            %v892 = vstv %s710
            %v893 = vmul.f32 %v885, %v892
            %v894 = vmul.f32 %v886, %v892
            %897 = vrot.lane.b32.xlu0 %v893, 127
            %v898 = vpop.permute.xlu0 %897
            %899 = vrot.lane.b32.xlu0 %v894, 127
            %v900 = vpop.permute.xlu0 %899
            %v903 = vadd.f32 %v890, %v898
            %v904 = vadd.f32 %v891, %v900
            %v905 = vstv %s719
            %v906 = vmul.f32 %v885, %v905
            %v907 = vmul.f32 %v886, %v905
            %910 = vrot.lane.b32.xlu0 %v906, 126
            %v911 = vpop.permute.xlu0 %910
            %912 = vrot.lane.b32.xlu0 %v907, 126
            %v913 = vpop.permute.xlu0 %912
            %v916 = vadd.f32 %v903, %v911
            %v917 = vadd.f32 %v904, %v913
            %s918 = smul.u32 %s449, 16
            %s919 = sadd.s32 %s918, %s552
            %s920 = scalar_lea.vmem %s164, %s919 [#allocation5]
            %921 = vst.msk [vmem:[%s920] sm:$0xff] %vm555, %v916
            %922 = vst.msk [vmem:[%s920 + $0x8] sm:$0xff] %vm555, %v917
          $region44: #{tpu_custom_call.1} parent=36 // loop_footer
            %s184 = sadd.s32 1, %s180
          $region45: #{tpu_custom_call.1} parent=36 // loop_footer_branch
            %179 = sbr.rel target = $region41
          $region46: #{tpu_custom_call.1} parent=36 // loop_exit
            _
        $region37: #{tpu_custom_call.1} parent=27 // loop_footer
          %s176 = sadd.s32 1, %s172
        $region38: #{tpu_custom_call.1} parent=27 // loop_footer_branch
          %171 = sbr.rel target = $region34
        $region39: #{tpu_custom_call.1} parent=27 // loop_exit
          _
        %s923 = sand.u32 %s86, 1
        %s924 = scalar_lea.sflag [#allocation3], %s923
        %s925 = sand.u32 %s86, 1
        %s926 = smul.addr %s925, 192
        %s927 = scalar_lea.vmem [#allocation5], %s926
        // Predicated region
        $region47: #{tpu_custom_call.1} parent=27 // pred_check
          %p928 = pneg %p96
        $region48: #{tpu_custom_call.1} parent=27 // pred_check_branch
          %930 = sbr.rel (%p928) target = $region50
        $region49: #{tpu_custom_call.1} parent=27 // pred_region
          %s931 = smul.u32 3, %s22
          %s933 = ssub.s32 3072, 3072
          %934 = vsyncadd %s924, %s933
          %s935 = smul.addr %s931, 8
          %s936 = smul.addr %s21, 24
          %s937 = sadd.s32 %s935, %s936
          %s938 = smul.addr %s937, 128
          %s939 = scalar_lea.hbm %s2, %s938
          %s940 = sshll.u32 %s927, 4
          %s941 = int_to_ptr.vmem [resolvable:$true] %s940
          %946 = dma.vmem_to_hbm [thread:$0]  %s941, 3072, %s939, %s924, 128, 128, 8
        $region50: #{tpu_custom_call.1} parent=27 // pred_fallthru
          _
      $region28: #{tpu_custom_call.1} parent=5 // pred_fallthru
        _
      %p947 = scmp.le.s32.totalorder 2, %s12
      // Predicated region
      $region51: #{tpu_custom_call.1} parent=5 // pred_check
        %p948 = pneg %p947
      $region52: #{tpu_custom_call.1} parent=5 // pred_check_branch
        %950 = sbr.rel (%p948) target = $region54
      $region53: #{tpu_custom_call.1} parent=5 // pred_region
        %s951 = ssub.s32 %s12, 2
        // Predicated region
        $region55: #{tpu_custom_call.1} parent=53 // pred_check
          %p952 = pneg %p102
        $region56: #{tpu_custom_call.1} parent=53 // pred_check_branch
          %954 = sbr.rel (%p952) target = $region58
        $region57: #{tpu_custom_call.1} parent=53 // pred_region
          %s955 = sand.u32 %s87, 1
          %s956 = scalar_lea.sflag [#allocation3], %s955
          %s957 = sand.u32 %s87, 1
          %s958 = smul.addr %s957, 192
          %s959 = scalar_lea.vmem [#allocation5], %s958
          %960 = dma.done %s956, 3072
        $region58: #{tpu_custom_call.1} parent=53 // pred_fallthru
          _
      $region54: #{tpu_custom_call.1} parent=5 // pred_fallthru
        _
    $region6: #{tpu_custom_call.1} parent=1 // loop_footer
      %s16 = sadd.s32 1, %s12
    $region7: #{tpu_custom_call.1} parent=1 // loop_footer_branch
      %11 = sbr.rel target = $region3
    $region8: #{tpu_custom_call.1} parent=1 // loop_exit
      _
    %961 = vsyncpa [#allocation3], 1
    %s962 = scalar_lea.sflag [#allocation3], 1
    %963 = vsyncpa %s962, 1
    %964 = vsyncpa [#allocation4], 1
    %s965 = scalar_lea.sflag [#allocation4], 1
    %966 = vsyncpa %s965, 1

</llo_original>
